<compile_context>
chip_gen: v6e
topology: v6e:2x2x1
jax: 0.10.0
libtpu: 0.0.40
codegen_flags: <defaults>
</compile_context>

<pallas_src>
import functools
import math

import jax
import jax.numpy as jnp
from jax import lax
from jax.experimental import pallas as pl
from jax.experimental.pallas import tpu as pltpu

_LANES = 128
_TB = 8  # batch rows per grid tile (one full sublane group)


def _round_up(x, m):
    return (x + m - 1) // m * m


def _prepare_kernel_params(params):
    """Fold Linear into GRU input weights, fold r/z hidden biases, pack gates."""
    w_in, b_in = params["w_in"], params["b_in"]          # (IN,H), (1,H)
    w_ih, w_hh = params["w_ih"], params["w_hh"]          # (H,3H), (H,3H)
    b_ih, b_hh = params["b_ih"], params["b_hh"]          # (1,3H), (1,3H)
    w_out, b_out = params["w_out"], params["b_out"]      # (H,OUT), (1,OUT)

    H = w_in.shape[1]
    G = 3 * H
    # Packed single-slab gate layout requires all three gates in one vreg row.
    assert G <= _LANES, "gate packing needs 3*hidden <= 128 (else per-gate slabs)"
    OUT = w_out.shape[1]
    OUTP = _round_up(OUT, _LANES)

    # gi = (x @ w_in + b_in) @ w_ih + b_ih = x @ (w_in @ w_ih) + (b_in @ w_ih + b_ih)
    w_cmb = w_in @ w_ih                                  # (IN, 3H)
    b_cmb = b_in @ w_ih + b_ih                           # (1, 3H)
    # r/z hidden biases only ever add to gi -> fold; the n-gate hidden bias is
    # inside r * (.) so it must stay on the hidden path.
    b_cmb = b_cmb.at[:, :2 * H].add(b_hh[:, :2 * H])
    b_hhn = b_hh[:, 2 * H:]                              # (1, H)

    def pad_gate_slab(a):                                # pad last dim 3H -> 128
        return jnp.pad(a, [(0, 0)] * (a.ndim - 1) + [(0, _LANES - G)])

    kp = {
        "w_cmb": pad_gate_slab(w_cmb).astype(jnp.bfloat16),    # (IN, 128)
        "b_cmb": pad_gate_slab(b_cmb).astype(jnp.float32),     # (1, 128)
        "w_hh": pad_gate_slab(w_hh).astype(jnp.bfloat16),      # (H, 128)  K = H (unpadded)
        "b_hhn": b_hhn.astype(jnp.float32),                    # (1, H)
        "w_out": jnp.pad(w_out, ((0, 0), (0, OUTP - OUT))).astype(jnp.bfloat16),  # (H, OUTP)
        "b_out": jnp.pad(b_out, ((0, 0), (0, OUTP - OUT))).astype(jnp.float32),   # (1, OUTP)
    }
    return kp, H, OUTP


def encoder_gru_kernel(x_ref,       # (TB, S, IN) f32  batch-first input tile
                       w_cmb_ref,   # (IN, 128)   bf16 folded in_ @ W_ih, packed [r|z|n|0]
                       b_cmb_ref,   # (1, 128)    f32  folded gi bias (+ r/z hidden bias)
                       w_hh_ref,    # (H, 128)    bf16 GRU hidden weights, packed gates
                       b_hhn_ref,   # (1, H)      f32  n-gate hidden bias
                       w_out_ref,   # (H, OUTP)   bf16 output Linear weight (lane-padded)
                       b_out_ref,   # (1, OUTP)   f32  output Linear bias
                       out_ref,     # (TB, OUTP)  f32  output[:, -1, :] (lane-padded)
                       hid_ref,     # (TB, H)     f32  final hidden state
                       *, seq_len, hidden_size):
    TB = x_ref.shape[0]
    S = seq_len
    H = hidden_size
    GP = w_cmb_ref.shape[1]

    # One small block load; everything below is VMEM/vreg resident.
    xb = x_ref[...]                                       # (TB, S, IN) f32
    w_cmb = w_cmb_ref[...]                                # (IN, GP) bf16
    w_hh = w_hh_ref[...]                                  # (H, GP)  bf16
    # Hoisted broadcasts (JAX does not CSE broadcasts inside loops).
    b_cmb = jnp.broadcast_to(b_cmb_ref[...], (TB, GP))
    b_hhn = jnp.broadcast_to(b_hhn_ref[...], (TB, H))

    h = jnp.zeros((TB, H), jnp.float32)                   # PyTorch default h0 = 0

    # Fully static unroll: S is a small compile-time constant, and gi_t below
    # has no dependence on h, so the scheduler overlaps step t+1's input
    # projection (MXU) with step t's serial gate math (VPU/EUP).
    # TODO(synk): for S beyond ~16 switch to lax.fori_loop(..., unroll=2..4)
    # with gi indexed via pl.ds to bound vreg live ranges.
    for t in range(S):
        x_t = xb[:, t, :].astype(jnp.bfloat16)            # (TB, IN), off the h-chain
        gi = jnp.dot(x_t, w_cmb,
                     preferred_element_type=jnp.float32) + b_cmb     # (TB, GP)
        gh = jnp.dot(h.astype(jnp.bfloat16), w_hh,
                     preferred_element_type=jnp.float32)              # (TB, GP), serial
        a = gi + gh
        # Packed gate extraction: static lane slices inside one 128-lane slab.
        r = jax.nn.sigmoid(a[:, 0 * H:1 * H])
        z = jax.nn.sigmoid(a[:, 1 * H:2 * H])
        n = jnp.tanh(gi[:, 2 * H:3 * H] + r * (gh[:, 2 * H:3 * H] + b_hhn))
        h = n + z * (h - n)                               # == (1-z)*n + z*h

    # Output Linear on the final hidden only (== output[:, -1, :]); OUTP = 128
    # lanes so this is a single unmasked lane-dense store.
    out_ref[...] = (jnp.dot(h.astype(jnp.bfloat16), w_out_ref[...],
                            preferred_element_type=jnp.float32)
                    + b_out_ref[...])
    hid_ref[...] = h


def encoder_rnn_with_vector(word_inputs, params):
    """word_inputs: (B, S, input_size) float32. Returns (output, hidden)."""
    B, S, IN = word_inputs.shape
    kp, H, OUTP = _prepare_kernel_params(params)
    OUT = params["w_out"].shape[1]
    GP = kp["w_cmb"].shape[1]

    # Pad batch to whole sublane tiles; each grid step handles one TB-row tile
    # (independent -> "parallel" so v7x can split tiles across its 2 TCs).
    Bp = _round_up(B, _TB)
    x = word_inputs
    if Bp != B:
        x = jnp.pad(x, ((0, Bp - B), (0, 0), (0, 0)))
    n_tiles = Bp // _TB

    # Cost hint based on what the kernel actually executes (packed shapes).
    flops = 2 * S * Bp * IN * GP + 2 * S * Bp * H * GP + 2 * Bp * H * OUTP
    transcendentals = 3 * S * Bp * H
    tensor_args = (x, kp["w_cmb"], kp["b_cmb"], kp["w_hh"], kp["b_hhn"],
                   kp["w_out"], kp["b_out"])
    bytes_accessed = (sum(int(a.size) * a.dtype.itemsize for a in tensor_args)
                      + Bp * OUTP * 4 + Bp * H * 4)

    # Note: no VMEM scratch any more (the old f32 (S*B, 3Hp) gi slab is gone),
    # so VMEM use is tiny and independent of S -- fits v7x's 64 MiB trivially.
    out_p, hid_p = pl.pallas_call(
        functools.partial(encoder_gru_kernel, seq_len=S, hidden_size=H),
        out_shape=(jax.ShapeDtypeStruct((Bp, OUTP), jnp.float32),
                   jax.ShapeDtypeStruct((Bp, H), jnp.float32)),
        grid=(n_tiles,),
        in_specs=[
            pl.BlockSpec((_TB, S, IN), lambda i: (i, 0, 0)),       # x: per batch tile
            pl.BlockSpec(kp["w_cmb"].shape, lambda i: (0, 0)),     # weights shared
            pl.BlockSpec(kp["b_cmb"].shape, lambda i: (0, 0)),
            pl.BlockSpec(kp["w_hh"].shape, lambda i: (0, 0)),
            pl.BlockSpec(kp["b_hhn"].shape, lambda i: (0, 0)),
            pl.BlockSpec(kp["w_out"].shape, lambda i: (0, 0)),
            pl.BlockSpec(kp["b_out"].shape, lambda i: (0, 0)),
        ],
        out_specs=(pl.BlockSpec((_TB, OUTP), lambda i: (i, 0)),
                   pl.BlockSpec((_TB, H), lambda i: (i, 0))),
        compiler_params=pltpu.CompilerParams(
            dimension_semantics=("parallel",)),
        cost_estimate=pl.CostEstimate(flops=int(flops),
                                      transcendentals=int(transcendentals),
                                      bytes_accessed=int(bytes_accessed)),
    )(*tensor_args)

    output = out_p[:B, :OUT]                              # (B, OUT)
    hidden = hid_p[None, :B, :]                           # (1, B, H)
    return output, hidden


def init_params(key, input_size, hidden_size, out_size):
    """Deterministic init mimicking PyTorch's uniform(-1/sqrt(fan_in), ...)."""
    ks = jax.random.split(key, 8)

    def u(k, shape, bound):
        return jax.random.uniform(k, shape, jnp.float32, -bound, bound)

    b_lin = 1.0 / math.sqrt(input_size)
    b_gru = 1.0 / math.sqrt(hidden_size)
    b_out = 1.0 / math.sqrt(hidden_size)
    return {
        "w_in":  u(ks[0], (input_size, hidden_size), b_lin),
        "b_in":  u(ks[1], (1, hidden_size), b_lin),
        "w_ih":  u(ks[2], (hidden_size, 3 * hidden_size), b_gru),
        "w_hh":  u(ks[3], (hidden_size, 3 * hidden_size), b_gru),
        "b_ih":  u(ks[4], (1, 3 * hidden_size), b_gru),
        "b_hh":  u(ks[5], (1, 3 * hidden_size), b_gru),
        "w_out": u(ks[6], (hidden_size, out_size), b_out),
        "b_out": u(ks[7], (1, out_size), b_out),
    }


def reference_forward(word_inputs, p):
    """Pure-JAX f32 reference matching the PyTorch module semantics."""
    B, S, IN = word_inputs.shape
    H = p["w_in"].shape[1]
    x = word_inputs @ p["w_in"] + p["b_in"]               # (B, S, H)

    def gru_step(h, x_t):
        gi = x_t @ p["w_ih"] + p["b_ih"]
        gh = h @ p["w_hh"] + p["b_hh"]
        i_r, i_z, i_n = gi[:, :H], gi[:, H:2 * H], gi[:, 2 * H:]
        h_r, h_z, h_n = gh[:, :H], gh[:, H:2 * H], gh[:, 2 * H:]
        r = jax.nn.sigmoid(i_r + h_r)
        z = jax.nn.sigmoid(i_z + h_z)
        n = jnp.tanh(i_n + r * h_n)
        h_new = (1.0 - z) * n + z * h
        return h_new, h_new

    h0 = jnp.zeros((B, H), jnp.float32)
    h_final, _ = lax.scan(gru_step, h0, jnp.transpose(x, (1, 0, 2)))
    out = h_final @ p["w_out"] + p["b_out"]               # output[:, -1, :]
    hidden = h_final[None]                                # (1, B, H)
    return out, hidden


if __name__ == "__main__":
    B, S, INPUT, HIDDEN, OUT = 2, 8, 16, 32, 8

    key = jax.random.PRNGKey(0)
    k_x, k_p = jax.random.split(key)
    word_inputs = jax.random.normal(k_x, (B, S, INPUT), jnp.float32)
    params = init_params(k_p, INPUT, HIDDEN, OUT)

    out, hidden = jax.jit(encoder_rnn_with_vector)(word_inputs, params)
    out = jax.block_until_ready(out)
    hidden = jax.block_until_ready(hidden)

    ref_out, ref_hidden = reference_forward(word_inputs, params)
    assert out.shape == (B, OUT) and hidden.shape == (1, B, HIDDEN)
    # bf16 MXU operands (f32 accumulation) -> loosen tolerance vs f32 reference.
    assert jnp.allclose(out, ref_out, atol=2e-2, rtol=2e-2), \
        float(jnp.max(jnp.abs(out - ref_out)))
    assert jnp.allclose(hidden, ref_hidden, atol=2e-2, rtol=2e-2), \
        float(jnp.max(jnp.abs(hidden - ref_hidden)))

    print("KERNEL_OK")
</pallas_src>

<mosaic_0001>
module attributes {stable_mosaic.version = 11 : i64} {
  func.func @encoder_gru_kernel(%arg0: i32, %arg1: memref<8x8x16xf32, #tpu.memory_space<vmem>>, %arg2: memref<16x128xbf16, #tpu.memory_space<vmem>>, %arg3: memref<1x128xf32, #tpu.memory_space<vmem>>, %arg4: memref<32x128xbf16, #tpu.memory_space<vmem>>, %arg5: memref<1x32xf32, #tpu.memory_space<vmem>>, %arg6: memref<32x128xbf16, #tpu.memory_space<vmem>>, %arg7: memref<1x128xf32, #tpu.memory_space<vmem>>, %arg8: memref<8x128xf32, #tpu.memory_space<vmem>>, %arg9: memref<8x32xf32, #tpu.memory_space<vmem>>) attributes {dimension_semantics = [#tpu.dimension_semantics<parallel>], iteration_bounds = array<i64: 1>, scalar_prefetch = 0 : i64, scratch_operands = 0 : i64, tpu.core_type = #tpu.core_type<tc>, window_params = [{transform_indices = @transform_0, window_bounds = array<i64: 8, 8, 16>}, {pipeline_mode = #tpu.pipeline_mode<synchronous>, transform_indices = @transform_1, window_bounds = array<i64: 16, 128>}, {pipeline_mode = #tpu.pipeline_mode<synchronous>, transform_indices = @transform_2, window_bounds = array<i64: 1, 128>}, {pipeline_mode = #tpu.pipeline_mode<synchronous>, transform_indices = @transform_3, window_bounds = array<i64: 32, 128>}, {pipeline_mode = #tpu.pipeline_mode<synchronous>, transform_indices = @transform_4, window_bounds = array<i64: 1, 32>}, {pipeline_mode = #tpu.pipeline_mode<synchronous>, transform_indices = @transform_5, window_bounds = array<i64: 32, 128>}, {pipeline_mode = #tpu.pipeline_mode<synchronous>, transform_indices = @transform_6, window_bounds = array<i64: 1, 128>}, {transform_indices = @transform_7, window_bounds = array<i64: 8, 128>}, {transform_indices = @transform_8, window_bounds = array<i64: 8, 32>}]} {
    %c0 = arith.constant 0 : index
    %c0_0 = arith.constant 0 : index
    %c0_1 = arith.constant 0 : index
    %0 = vector.load %arg1[%c0, %c0_0, %c0_1] : memref<8x8x16xf32, #tpu.memory_space<vmem>>, vector<8x8x16xf32>
    %c0_2 = arith.constant 0 : index
    %c0_3 = arith.constant 0 : index
    %1 = vector.load %arg2[%c0_2, %c0_3] : memref<16x128xbf16, #tpu.memory_space<vmem>>, vector<16x128xbf16>
    %c0_4 = arith.constant 0 : index
    %c0_5 = arith.constant 0 : index
    %2 = vector.load %arg4[%c0_4, %c0_5] : memref<32x128xbf16, #tpu.memory_space<vmem>>, vector<32x128xbf16>
    %c0_6 = arith.constant 0 : index
    %c0_7 = arith.constant 0 : index
    %3 = vector.load %arg3[%c0_6, %c0_7] : memref<1x128xf32, #tpu.memory_space<vmem>>, vector<1x128xf32>
    %4 = vector.shape_cast %3 : vector<1x128xf32> to vector<1x128xf32>
    %5 = vector.broadcast %4 : vector<1x128xf32> to vector<8x128xf32>
    %c0_8 = arith.constant 0 : index
    %c0_9 = arith.constant 0 : index
    %6 = vector.load %arg5[%c0_8, %c0_9] : memref<1x32xf32, #tpu.memory_space<vmem>>, vector<1x32xf32>
    %7 = vector.shape_cast %6 : vector<1x32xf32> to vector<1x32xf32>
    %8 = vector.broadcast %7 : vector<1x32xf32> to vector<8x32xf32>
    %cst = arith.constant 0.000000e+00 : f32
    %9 = vector.broadcast %cst : f32 to vector<8x32xf32>
    %10 = vector.extract_strided_slice %0 {offsets = [0, 0, 0], sizes = [8, 1, 16], strides = [1, 1, 1]} : vector<8x8x16xf32> to vector<8x1x16xf32>
    %11 = vector.shape_cast %10 : vector<8x1x16xf32> to vector<8x16xf32>
    %12 = arith.truncf %11 : vector<8x16xf32> to vector<8x16xbf16>
    %cst_10 = arith.constant dense<0.000000e+00> : vector<8x128xf32>
    %13 = tpu.matmul %12, %1, %cst_10 {dimension_numbers = #tpu.dot_dimension_numbers<[1], [0], [0], [1], [0, 0, 1, 1], [], []>} : vector<8x16xbf16>, vector<16x128xbf16>, vector<8x128xf32> -> vector<8x128xf32>
    %14 = arith.addf %13, %5 : vector<8x128xf32>
    %15 = arith.truncf %9 : vector<8x32xf32> to vector<8x32xbf16>
    %cst_11 = arith.constant dense<0.000000e+00> : vector<8x128xf32>
    %16 = tpu.matmul %15, %2, %cst_11 {dimension_numbers = #tpu.dot_dimension_numbers<[1], [0], [0], [1], [0, 0, 1, 1], [], []>} : vector<8x32xbf16>, vector<32x128xbf16>, vector<8x128xf32> -> vector<8x128xf32>
    %17 = arith.addf %14, %16 : vector<8x128xf32>
    %18 = vector.extract_strided_slice %17 {offsets = [0, 0], sizes = [8, 32], strides = [1, 1]} : vector<8x128xf32> to vector<8x32xf32>
    %19 = arith.negf %18 : vector<8x32xf32>
    %20 = math.exp %19 : vector<8x32xf32>
    %cst_12 = arith.constant 1.000000e+00 : f32
    %21 = vector.broadcast %cst_12 : f32 to vector<8x32xf32>
    %22 = arith.addf %21, %20 : vector<8x32xf32>
    %23 = arith.divf %21, %22 : vector<8x32xf32>
    %24 = vector.extract_strided_slice %17 {offsets = [0, 32], sizes = [8, 32], strides = [1, 1]} : vector<8x128xf32> to vector<8x32xf32>
    %25 = arith.negf %24 : vector<8x32xf32>
    %26 = math.exp %25 : vector<8x32xf32>
    %cst_13 = arith.constant 1.000000e+00 : f32
    %27 = vector.broadcast %cst_13 : f32 to vector<8x32xf32>
    %28 = arith.addf %27, %26 : vector<8x32xf32>
    %29 = arith.divf %27, %28 : vector<8x32xf32>
    %30 = vector.extract_strided_slice %14 {offsets = [0, 64], sizes = [8, 32], strides = [1, 1]} : vector<8x128xf32> to vector<8x32xf32>
    %31 = vector.extract_strided_slice %16 {offsets = [0, 64], sizes = [8, 32], strides = [1, 1]} : vector<8x128xf32> to vector<8x32xf32>
    %32 = arith.addf %31, %8 : vector<8x32xf32>
    %33 = arith.mulf %23, %32 : vector<8x32xf32>
    %34 = arith.addf %30, %33 : vector<8x32xf32>
    %35 = math.tanh %34 : vector<8x32xf32>
    %36 = arith.subf %9, %35 : vector<8x32xf32>
    %37 = arith.mulf %29, %36 : vector<8x32xf32>
    %38 = arith.addf %35, %37 : vector<8x32xf32>
    %39 = vector.extract_strided_slice %0 {offsets = [0, 1, 0], sizes = [8, 1, 16], strides = [1, 1, 1]} : vector<8x8x16xf32> to vector<8x1x16xf32>
    %40 = vector.shape_cast %39 : vector<8x1x16xf32> to vector<8x16xf32>
    %41 = arith.truncf %40 : vector<8x16xf32> to vector<8x16xbf16>
    %cst_14 = arith.constant dense<0.000000e+00> : vector<8x128xf32>
    %42 = tpu.matmul %41, %1, %cst_14 {dimension_numbers = #tpu.dot_dimension_numbers<[1], [0], [0], [1], [0, 0, 1, 1], [], []>} : vector<8x16xbf16>, vector<16x128xbf16>, vector<8x128xf32> -> vector<8x128xf32>
    %43 = arith.addf %42, %5 : vector<8x128xf32>
    %44 = arith.truncf %38 : vector<8x32xf32> to vector<8x32xbf16>
    %cst_15 = arith.constant dense<0.000000e+00> : vector<8x128xf32>
    %45 = tpu.matmul %44, %2, %cst_15 {dimension_numbers = #tpu.dot_dimension_numbers<[1], [0], [0], [1], [0, 0, 1, 1], [], []>} : vector<8x32xbf16>, vector<32x128xbf16>, vector<8x128xf32> -> vector<8x128xf32>
    %46 = arith.addf %43, %45 : vector<8x128xf32>
    %47 = vector.extract_strided_slice %46 {offsets = [0, 0], sizes = [8, 32], strides = [1, 1]} : vector<8x128xf32> to vector<8x32xf32>
    %48 = arith.negf %47 : vector<8x32xf32>
    %49 = math.exp %48 : vector<8x32xf32>
    %cst_16 = arith.constant 1.000000e+00 : f32
    %50 = vector.broadcast %cst_16 : f32 to vector<8x32xf32>
    %51 = arith.addf %50, %49 : vector<8x32xf32>
    %52 = arith.divf %50, %51 : vector<8x32xf32>
    %53 = vector.extract_strided_slice %46 {offsets = [0, 32], sizes = [8, 32], strides = [1, 1]} : vector<8x128xf32> to vector<8x32xf32>
    %54 = arith.negf %53 : vector<8x32xf32>
    %55 = math.exp %54 : vector<8x32xf32>
    %cst_17 = arith.constant 1.000000e+00 : f32
    %56 = vector.broadcast %cst_17 : f32 to vector<8x32xf32>
    %57 = arith.addf %56, %55 : vector<8x32xf32>
    %58 = arith.divf %56, %57 : vector<8x32xf32>
    %59 = vector.extract_strided_slice %43 {offsets = [0, 64], sizes = [8, 32], strides = [1, 1]} : vector<8x128xf32> to vector<8x32xf32>
    %60 = vector.extract_strided_slice %45 {offsets = [0, 64], sizes = [8, 32], strides = [1, 1]} : vector<8x128xf32> to vector<8x32xf32>
    %61 = arith.addf %60, %8 : vector<8x32xf32>
    %62 = arith.mulf %52, %61 : vector<8x32xf32>
    %63 = arith.addf %59, %62 : vector<8x32xf32>
    %64 = math.tanh %63 : vector<8x32xf32>
    %65 = arith.subf %38, %64 : vector<8x32xf32>
    %66 = arith.mulf %58, %65 : vector<8x32xf32>
    %67 = arith.addf %64, %66 : vector<8x32xf32>
    %68 = vector.extract_strided_slice %0 {offsets = [0, 2, 0], sizes = [8, 1, 16], strides = [1, 1, 1]} : vector<8x8x16xf32> to vector<8x1x16xf32>
    %69 = vector.shape_cast %68 : vector<8x1x16xf32> to vector<8x16xf32>
    %70 = arith.truncf %69 : vector<8x16xf32> to vector<8x16xbf16>
    %cst_18 = arith.constant dense<0.000000e+00> : vector<8x128xf32>
    %71 = tpu.matmul %70, %1, %cst_18 {dimension_numbers = #tpu.dot_dimension_numbers<[1], [0], [0], [1], [0, 0, 1, 1], [], []>} : vector<8x16xbf16>, vector<16x128xbf16>, vector<8x128xf32> -> vector<8x128xf32>
    %72 = arith.addf %71, %5 : vector<8x128xf32>
    %73 = arith.truncf %67 : vector<8x32xf32> to vector<8x32xbf16>
    %cst_19 = arith.constant dense<0.000000e+00> : vector<8x128xf32>
    %74 = tpu.matmul %73, %2, %cst_19 {dimension_numbers = #tpu.dot_dimension_numbers<[1], [0], [0], [1], [0, 0, 1, 1], [], []>} : vector<8x32xbf16>, vector<32x128xbf16>, vector<8x128xf32> -> vector<8x128xf32>
    %75 = arith.addf %72, %74 : vector<8x128xf32>
    %76 = vector.extract_strided_slice %75 {offsets = [0, 0], sizes = [8, 32], strides = [1, 1]} : vector<8x128xf32> to vector<8x32xf32>
    %77 = arith.negf %76 : vector<8x32xf32>
    %78 = math.exp %77 : vector<8x32xf32>
    %cst_20 = arith.constant 1.000000e+00 : f32
    %79 = vector.broadcast %cst_20 : f32 to vector<8x32xf32>
    %80 = arith.addf %79, %78 : vector<8x32xf32>
    %81 = arith.divf %79, %80 : vector<8x32xf32>
    %82 = vector.extract_strided_slice %75 {offsets = [0, 32], sizes = [8, 32], strides = [1, 1]} : vector<8x128xf32> to vector<8x32xf32>
    %83 = arith.negf %82 : vector<8x32xf32>
    %84 = math.exp %83 : vector<8x32xf32>
    %cst_21 = arith.constant 1.000000e+00 : f32
    %85 = vector.broadcast %cst_21 : f32 to vector<8x32xf32>
    %86 = arith.addf %85, %84 : vector<8x32xf32>
    %87 = arith.divf %85, %86 : vector<8x32xf32>
    %88 = vector.extract_strided_slice %72 {offsets = [0, 64], sizes = [8, 32], strides = [1, 1]} : vector<8x128xf32> to vector<8x32xf32>
    %89 = vector.extract_strided_slice %74 {offsets = [0, 64], sizes = [8, 32], strides = [1, 1]} : vector<8x128xf32> to vector<8x32xf32>
    %90 = arith.addf %89, %8 : vector<8x32xf32>
    %91 = arith.mulf %81, %90 : vector<8x32xf32>
    %92 = arith.addf %88, %91 : vector<8x32xf32>
    %93 = math.tanh %92 : vector<8x32xf32>
    %94 = arith.subf %67, %93 : vector<8x32xf32>
    %95 = arith.mulf %87, %94 : vector<8x32xf32>
    %96 = arith.addf %93, %95 : vector<8x32xf32>
    %97 = vector.extract_strided_slice %0 {offsets = [0, 3, 0], sizes = [8, 1, 16], strides = [1, 1, 1]} : vector<8x8x16xf32> to vector<8x1x16xf32>
    %98 = vector.shape_cast %97 : vector<8x1x16xf32> to vector<8x16xf32>
    %99 = arith.truncf %98 : vector<8x16xf32> to vector<8x16xbf16>
    %cst_22 = arith.constant dense<0.000000e+00> : vector<8x128xf32>
    %100 = tpu.matmul %99, %1, %cst_22 {dimension_numbers = #tpu.dot_dimension_numbers<[1], [0], [0], [1], [0, 0, 1, 1], [], []>} : vector<8x16xbf16>, vector<16x128xbf16>, vector<8x128xf32> -> vector<8x128xf32>
    %101 = arith.addf %100, %5 : vector<8x128xf32>
    %102 = arith.truncf %96 : vector<8x32xf32> to vector<8x32xbf16>
    %cst_23 = arith.constant dense<0.000000e+00> : vector<8x128xf32>
    %103 = tpu.matmul %102, %2, %cst_23 {dimension_numbers = #tpu.dot_dimension_numbers<[1], [0], [0], [1], [0, 0, 1, 1], [], []>} : vector<8x32xbf16>, vector<32x128xbf16>, vector<8x128xf32> -> vector<8x128xf32>
    %104 = arith.addf %101, %103 : vector<8x128xf32>
    %105 = vector.extract_strided_slice %104 {offsets = [0, 0], sizes = [8, 32], strides = [1, 1]} : vector<8x128xf32> to vector<8x32xf32>
    %106 = arith.negf %105 : vector<8x32xf32>
    %107 = math.exp %106 : vector<8x32xf32>
    %cst_24 = arith.constant 1.000000e+00 : f32
    %108 = vector.broadcast %cst_24 : f32 to vector<8x32xf32>
    %109 = arith.addf %108, %107 : vector<8x32xf32>
    %110 = arith.divf %108, %109 : vector<8x32xf32>
    %111 = vector.extract_strided_slice %104 {offsets = [0, 32], sizes = [8, 32], strides = [1, 1]} : vector<8x128xf32> to vector<8x32xf32>
    %112 = arith.negf %111 : vector<8x32xf32>
    %113 = math.exp %112 : vector<8x32xf32>
    %cst_25 = arith.constant 1.000000e+00 : f32
    %114 = vector.broadcast %cst_25 : f32 to vector<8x32xf32>
    %115 = arith.addf %114, %113 : vector<8x32xf32>
    %116 = arith.divf %114, %115 : vector<8x32xf32>
    %117 = vector.extract_strided_slice %101 {offsets = [0, 64], sizes = [8, 32], strides = [1, 1]} : vector<8x128xf32> to vector<8x32xf32>
    %118 = vector.extract_strided_slice %103 {offsets = [0, 64], sizes = [8, 32], strides = [1, 1]} : vector<8x128xf32> to vector<8x32xf32>
    %119 = arith.addf %118, %8 : vector<8x32xf32>
    %120 = arith.mulf %110, %119 : vector<8x32xf32>
    %121 = arith.addf %117, %120 : vector<8x32xf32>
    %122 = math.tanh %121 : vector<8x32xf32>
    %123 = arith.subf %96, %122 : vector<8x32xf32>
    %124 = arith.mulf %116, %123 : vector<8x32xf32>
    %125 = arith.addf %122, %124 : vector<8x32xf32>
    %126 = vector.extract_strided_slice %0 {offsets = [0, 4, 0], sizes = [8, 1, 16], strides = [1, 1, 1]} : vector<8x8x16xf32> to vector<8x1x16xf32>
    %127 = vector.shape_cast %126 : vector<8x1x16xf32> to vector<8x16xf32>
    %128 = arith.truncf %127 : vector<8x16xf32> to vector<8x16xbf16>
    %cst_26 = arith.constant dense<0.000000e+00> : vector<8x128xf32>
    %129 = tpu.matmul %128, %1, %cst_26 {dimension_numbers = #tpu.dot_dimension_numbers<[1], [0], [0], [1], [0, 0, 1, 1], [], []>} : vector<8x16xbf16>, vector<16x128xbf16>, vector<8x128xf32> -> vector<8x128xf32>
    %130 = arith.addf %129, %5 : vector<8x128xf32>
    %131 = arith.truncf %125 : vector<8x32xf32> to vector<8x32xbf16>
    %cst_27 = arith.constant dense<0.000000e+00> : vector<8x128xf32>
    %132 = tpu.matmul %131, %2, %cst_27 {dimension_numbers = #tpu.dot_dimension_numbers<[1], [0], [0], [1], [0, 0, 1, 1], [], []>} : vector<8x32xbf16>, vector<32x128xbf16>, vector<8x128xf32> -> vector<8x128xf32>
    %133 = arith.addf %130, %132 : vector<8x128xf32>
    %134 = vector.extract_strided_slice %133 {offsets = [0, 0], sizes = [8, 32], strides = [1, 1]} : vector<8x128xf32> to vector<8x32xf32>
    %135 = arith.negf %134 : vector<8x32xf32>
    %136 = math.exp %135 : vector<8x32xf32>
    %cst_28 = arith.constant 1.000000e+00 : f32
    %137 = vector.broadcast %cst_28 : f32 to vector<8x32xf32>
    %138 = arith.addf %137, %136 : vector<8x32xf32>
    %139 = arith.divf %137, %138 : vector<8x32xf32>
    %140 = vector.extract_strided_slice %133 {offsets = [0, 32], sizes = [8, 32], strides = [1, 1]} : vector<8x128xf32> to vector<8x32xf32>
    %141 = arith.negf %140 : vector<8x32xf32>
    %142 = math.exp %141 : vector<8x32xf32>
    %cst_29 = arith.constant 1.000000e+00 : f32
    %143 = vector.broadcast %cst_29 : f32 to vector<8x32xf32>
    %144 = arith.addf %143, %142 : vector<8x32xf32>
    %145 = arith.divf %143, %144 : vector<8x32xf32>
    %146 = vector.extract_strided_slice %130 {offsets = [0, 64], sizes = [8, 32], strides = [1, 1]} : vector<8x128xf32> to vector<8x32xf32>
    %147 = vector.extract_strided_slice %132 {offsets = [0, 64], sizes = [8, 32], strides = [1, 1]} : vector<8x128xf32> to vector<8x32xf32>
    %148 = arith.addf %147, %8 : vector<8x32xf32>
    %149 = arith.mulf %139, %148 : vector<8x32xf32>
    %150 = arith.addf %146, %149 : vector<8x32xf32>
    %151 = math.tanh %150 : vector<8x32xf32>
    %152 = arith.subf %125, %151 : vector<8x32xf32>
    %153 = arith.mulf %145, %152 : vector<8x32xf32>
    %154 = arith.addf %151, %153 : vector<8x32xf32>
    %155 = vector.extract_strided_slice %0 {offsets = [0, 5, 0], sizes = [8, 1, 16], strides = [1, 1, 1]} : vector<8x8x16xf32> to vector<8x1x16xf32>
    %156 = vector.shape_cast %155 : vector<8x1x16xf32> to vector<8x16xf32>
    %157 = arith.truncf %156 : vector<8x16xf32> to vector<8x16xbf16>
    %cst_30 = arith.constant dense<0.000000e+00> : vector<8x128xf32>
    %158 = tpu.matmul %157, %1, %cst_30 {dimension_numbers = #tpu.dot_dimension_numbers<[1], [0], [0], [1], [0, 0, 1, 1], [], []>} : vector<8x16xbf16>, vector<16x128xbf16>, vector<8x128xf32> -> vector<8x128xf32>
    %159 = arith.addf %158, %5 : vector<8x128xf32>
    %160 = arith.truncf %154 : vector<8x32xf32> to vector<8x32xbf16>
    %cst_31 = arith.constant dense<0.000000e+00> : vector<8x128xf32>
    %161 = tpu.matmul %160, %2, %cst_31 {dimension_numbers = #tpu.dot_dimension_numbers<[1], [0], [0], [1], [0, 0, 1, 1], [], []>} : vector<8x32xbf16>, vector<32x128xbf16>, vector<8x128xf32> -> vector<8x128xf32>
    %162 = arith.addf %159, %161 : vector<8x128xf32>
    %163 = vector.extract_strided_slice %162 {offsets = [0, 0], sizes = [8, 32], strides = [1, 1]} : vector<8x128xf32> to vector<8x32xf32>
    %164 = arith.negf %163 : vector<8x32xf32>
    %165 = math.exp %164 : vector<8x32xf32>
    %cst_32 = arith.constant 1.000000e+00 : f32
    %166 = vector.broadcast %cst_32 : f32 to vector<8x32xf32>
    %167 = arith.addf %166, %165 : vector<8x32xf32>
    %168 = arith.divf %166, %167 : vector<8x32xf32>
    %169 = vector.extract_strided_slice %162 {offsets = [0, 32], sizes = [8, 32], strides = [1, 1]} : vector<8x128xf32> to vector<8x32xf32>
    %170 = arith.negf %169 : vector<8x32xf32>
    %171 = math.exp %170 : vector<8x32xf32>
    %cst_33 = arith.constant 1.000000e+00 : f32
    %172 = vector.broadcast %cst_33 : f32 to vector<8x32xf32>
    %173 = arith.addf %172, %171 : vector<8x32xf32>
    %174 = arith.divf %172, %173 : vector<8x32xf32>
    %175 = vector.extract_strided_slice %159 {offsets = [0, 64], sizes = [8, 32], strides = [1, 1]} : vector<8x128xf32> to vector<8x32xf32>
    %176 = vector.extract_strided_slice %161 {offsets = [0, 64], sizes = [8, 32], strides = [1, 1]} : vector<8x128xf32> to vector<8x32xf32>
    %177 = arith.addf %176, %8 : vector<8x32xf32>
    %178 = arith.mulf %168, %177 : vector<8x32xf32>
    %179 = arith.addf %175, %178 : vector<8x32xf32>
    %180 = math.tanh %179 : vector<8x32xf32>
    %181 = arith.subf %154, %180 : vector<8x32xf32>
    %182 = arith.mulf %174, %181 : vector<8x32xf32>
    %183 = arith.addf %180, %182 : vector<8x32xf32>
    %184 = vector.extract_strided_slice %0 {offsets = [0, 6, 0], sizes = [8, 1, 16], strides = [1, 1, 1]} : vector<8x8x16xf32> to vector<8x1x16xf32>
    %185 = vector.shape_cast %184 : vector<8x1x16xf32> to vector<8x16xf32>
    %186 = arith.truncf %185 : vector<8x16xf32> to vector<8x16xbf16>
    %cst_34 = arith.constant dense<0.000000e+00> : vector<8x128xf32>
    %187 = tpu.matmul %186, %1, %cst_34 {dimension_numbers = #tpu.dot_dimension_numbers<[1], [0], [0], [1], [0, 0, 1, 1], [], []>} : vector<8x16xbf16>, vector<16x128xbf16>, vector<8x128xf32> -> vector<8x128xf32>
    %188 = arith.addf %187, %5 : vector<8x128xf32>
    %189 = arith.truncf %183 : vector<8x32xf32> to vector<8x32xbf16>
    %cst_35 = arith.constant dense<0.000000e+00> : vector<8x128xf32>
    %190 = tpu.matmul %189, %2, %cst_35 {dimension_numbers = #tpu.dot_dimension_numbers<[1], [0], [0], [1], [0, 0, 1, 1], [], []>} : vector<8x32xbf16>, vector<32x128xbf16>, vector<8x128xf32> -> vector<8x128xf32>
    %191 = arith.addf %188, %190 : vector<8x128xf32>
    %192 = vector.extract_strided_slice %191 {offsets = [0, 0], sizes = [8, 32], strides = [1, 1]} : vector<8x128xf32> to vector<8x32xf32>
    %193 = arith.negf %192 : vector<8x32xf32>
    %194 = math.exp %193 : vector<8x32xf32>
    %cst_36 = arith.constant 1.000000e+00 : f32
    %195 = vector.broadcast %cst_36 : f32 to vector<8x32xf32>
    %196 = arith.addf %195, %194 : vector<8x32xf32>
    %197 = arith.divf %195, %196 : vector<8x32xf32>
    %198 = vector.extract_strided_slice %191 {offsets = [0, 32], sizes = [8, 32], strides = [1, 1]} : vector<8x128xf32> to vector<8x32xf32>
    %199 = arith.negf %198 : vector<8x32xf32>
    %200 = math.exp %199 : vector<8x32xf32>
    %cst_37 = arith.constant 1.000000e+00 : f32
    %201 = vector.broadcast %cst_37 : f32 to vector<8x32xf32>
    %202 = arith.addf %201, %200 : vector<8x32xf32>
    %203 = arith.divf %201, %202 : vector<8x32xf32>
    %204 = vector.extract_strided_slice %188 {offsets = [0, 64], sizes = [8, 32], strides = [1, 1]} : vector<8x128xf32> to vector<8x32xf32>
    %205 = vector.extract_strided_slice %190 {offsets = [0, 64], sizes = [8, 32], strides = [1, 1]} : vector<8x128xf32> to vector<8x32xf32>
    %206 = arith.addf %205, %8 : vector<8x32xf32>
    %207 = arith.mulf %197, %206 : vector<8x32xf32>
    %208 = arith.addf %204, %207 : vector<8x32xf32>
    %209 = math.tanh %208 : vector<8x32xf32>
    %210 = arith.subf %183, %209 : vector<8x32xf32>
    %211 = arith.mulf %203, %210 : vector<8x32xf32>
    %212 = arith.addf %209, %211 : vector<8x32xf32>
    %213 = vector.extract_strided_slice %0 {offsets = [0, 7, 0], sizes = [8, 1, 16], strides = [1, 1, 1]} : vector<8x8x16xf32> to vector<8x1x16xf32>
    %214 = vector.shape_cast %213 : vector<8x1x16xf32> to vector<8x16xf32>
    %215 = arith.truncf %214 : vector<8x16xf32> to vector<8x16xbf16>
    %cst_38 = arith.constant dense<0.000000e+00> : vector<8x128xf32>
    %216 = tpu.matmul %215, %1, %cst_38 {dimension_numbers = #tpu.dot_dimension_numbers<[1], [0], [0], [1], [0, 0, 1, 1], [], []>} : vector<8x16xbf16>, vector<16x128xbf16>, vector<8x128xf32> -> vector<8x128xf32>
    %217 = arith.addf %216, %5 : vector<8x128xf32>
    %218 = arith.truncf %212 : vector<8x32xf32> to vector<8x32xbf16>
    %cst_39 = arith.constant dense<0.000000e+00> : vector<8x128xf32>
    %219 = tpu.matmul %218, %2, %cst_39 {dimension_numbers = #tpu.dot_dimension_numbers<[1], [0], [0], [1], [0, 0, 1, 1], [], []>} : vector<8x32xbf16>, vector<32x128xbf16>, vector<8x128xf32> -> vector<8x128xf32>
    %220 = arith.addf %217, %219 : vector<8x128xf32>
    %221 = vector.extract_strided_slice %220 {offsets = [0, 0], sizes = [8, 32], strides = [1, 1]} : vector<8x128xf32> to vector<8x32xf32>
    %222 = arith.negf %221 : vector<8x32xf32>
    %223 = math.exp %222 : vector<8x32xf32>
    %cst_40 = arith.constant 1.000000e+00 : f32
    %224 = vector.broadcast %cst_40 : f32 to vector<8x32xf32>
    %225 = arith.addf %224, %223 : vector<8x32xf32>
    %226 = arith.divf %224, %225 : vector<8x32xf32>
    %227 = vector.extract_strided_slice %220 {offsets = [0, 32], sizes = [8, 32], strides = [1, 1]} : vector<8x128xf32> to vector<8x32xf32>
    %228 = arith.negf %227 : vector<8x32xf32>
    %229 = math.exp %228 : vector<8x32xf32>
    %cst_41 = arith.constant 1.000000e+00 : f32
    %230 = vector.broadcast %cst_41 : f32 to vector<8x32xf32>
    %231 = arith.addf %230, %229 : vector<8x32xf32>
    %232 = arith.divf %230, %231 : vector<8x32xf32>
    %233 = vector.extract_strided_slice %217 {offsets = [0, 64], sizes = [8, 32], strides = [1, 1]} : vector<8x128xf32> to vector<8x32xf32>
    %234 = vector.extract_strided_slice %219 {offsets = [0, 64], sizes = [8, 32], strides = [1, 1]} : vector<8x128xf32> to vector<8x32xf32>
    %235 = arith.addf %234, %8 : vector<8x32xf32>
    %236 = arith.mulf %226, %235 : vector<8x32xf32>
    %237 = arith.addf %233, %236 : vector<8x32xf32>
    %238 = math.tanh %237 : vector<8x32xf32>
    %239 = arith.subf %212, %238 : vector<8x32xf32>
    %240 = arith.mulf %232, %239 : vector<8x32xf32>
    %241 = arith.addf %238, %240 : vector<8x32xf32>
    %242 = arith.truncf %241 : vector<8x32xf32> to vector<8x32xbf16>
    %c0_42 = arith.constant 0 : index
    %c0_43 = arith.constant 0 : index
    %243 = vector.load %arg6[%c0_42, %c0_43] : memref<32x128xbf16, #tpu.memory_space<vmem>>, vector<32x128xbf16>
    %cst_44 = arith.constant dense<0.000000e+00> : vector<8x128xf32>
    %244 = tpu.matmul %242, %243, %cst_44 {dimension_numbers = #tpu.dot_dimension_numbers<[1], [0], [0], [1], [0, 0, 1, 1], [], []>} : vector<8x32xbf16>, vector<32x128xbf16>, vector<8x128xf32> -> vector<8x128xf32>
    %c0_45 = arith.constant 0 : index
    %c0_46 = arith.constant 0 : index
    %245 = vector.load %arg7[%c0_45, %c0_46] : memref<1x128xf32, #tpu.memory_space<vmem>>, vector<1x128xf32>
    %246 = vector.broadcast %245 : vector<1x128xf32> to vector<8x128xf32>
    %247 = arith.addf %244, %246 : vector<8x128xf32>
    %c0_47 = arith.constant 0 : index
    %c0_48 = arith.constant 0 : index
    %248 = vector.load %arg8[%c0_47, %c0_48] : memref<8x128xf32, #tpu.memory_space<vmem>>, vector<8x128xf32>
    tpu.vector_store %arg8[%c0_47, %c0_48], %247 {strides = array<i32>} : memref<8x128xf32, #tpu.memory_space<vmem>>, vector<8x128xf32>,
    %c0_49 = arith.constant 0 : index
    %c0_50 = arith.constant 0 : index
    %249 = vector.load %arg9[%c0_49, %c0_50] : memref<8x32xf32, #tpu.memory_space<vmem>>, vector<8x32xf32>
    tpu.vector_store %arg9[%c0_49, %c0_50], %241 {strides = array<i32>} : memref<8x32xf32, #tpu.memory_space<vmem>>, vector<8x32xf32>,
    return
  }
  func.func @transform_0(%arg0: i32) -> (i32, i32, i32) {
    %c0_i32 = arith.constant 0 : i32
    %c0_i32_0 = arith.constant 0 : i32
    %c0_i32_1 = arith.constant 0 : i32
    return %arg0, %c0_i32, %c0_i32_0 : i32, i32, i32
  }
  func.func @transform_1(%arg0: i32) -> (i32, i32) {
    %c0_i32 = arith.constant 0 : i32
    %c0_i32_0 = arith.constant 0 : i32
    %c0_i32_1 = arith.constant 0 : i32
    return %c0_i32, %c0_i32_0 : i32, i32
  }
  func.func @transform_2(%arg0: i32) -> (i32, i32) {
    %c0_i32 = arith.constant 0 : i32
    %c0_i32_0 = arith.constant 0 : i32
    %c0_i32_1 = arith.constant 0 : i32
    return %c0_i32, %c0_i32_0 : i32, i32
  }
  func.func @transform_3(%arg0: i32) -> (i32, i32) {
    %c0_i32 = arith.constant 0 : i32
    %c0_i32_0 = arith.constant 0 : i32
    %c0_i32_1 = arith.constant 0 : i32
    return %c0_i32, %c0_i32_0 : i32, i32
  }
  func.func @transform_4(%arg0: i32) -> (i32, i32) {
    %c0_i32 = arith.constant 0 : i32
    %c0_i32_0 = arith.constant 0 : i32
    %c0_i32_1 = arith.constant 0 : i32
    return %c0_i32, %c0_i32_0 : i32, i32
  }
  func.func @transform_5(%arg0: i32) -> (i32, i32) {
    %c0_i32 = arith.constant 0 : i32
    %c0_i32_0 = arith.constant 0 : i32
    %c0_i32_1 = arith.constant 0 : i32
    return %c0_i32, %c0_i32_0 : i32, i32
  }
  func.func @transform_6(%arg0: i32) -> (i32, i32) {
    %c0_i32 = arith.constant 0 : i32
    %c0_i32_0 = arith.constant 0 : i32
    %c0_i32_1 = arith.constant 0 : i32
    return %c0_i32, %c0_i32_0 : i32, i32
  }
  func.func @transform_7(%arg0: i32) -> (i32, i32) {
    %c0_i32 = arith.constant 0 : i32
    %c0_i32_0 = arith.constant 0 : i32
    return %arg0, %c0_i32 : i32, i32
  }
  func.func @transform_8(%arg0: i32) -> (i32, i32) {
    %c0_i32 = arith.constant 0 : i32
    %c0_i32_0 = arith.constant 0 : i32
    return %arg0, %c0_i32 : i32, i32
  }
}

</mosaic_0001>

<llo_original>
// kernel: encoder_rnn_with_vector.1
$region0: #{encoder_rnn_with_vector.1}
  #allocation0 [shape = 'u32[]', space=smem, size = 0x4, offset = 0x4, fixed_abs, tag = 'smem constant byte address 0x4 - core index']
  #allocation1 [shape = 'u32[144,128]{1,0:T(1,128)}', space=vmem, size = 0x12000, scoped, tag = 'internal scratch']
  %s0 = inlined_call_operand.vmem [shape: f32[8,8,16], index: 0, kind: input, shape index: {}]
  %s1 = inlined_call_operand.vmem [shape: bf16[16,128], index: 1, kind: input, shape index: {}]
  %s2 = inlined_call_operand.vmem [shape: f32[1,128], index: 2, kind: input, shape index: {}]
  %s3 = inlined_call_operand.vmem [shape: bf16[32,128], index: 3, kind: input, shape index: {}]
  %s4 = inlined_call_operand.vmem [shape: f32[1,32], index: 4, kind: input, shape index: {}]
  %s5 = inlined_call_operand.vmem [shape: bf16[32,128], index: 5, kind: input, shape index: {}]
  %s6 = inlined_call_operand.vmem [shape: f32[1,128], index: 6, kind: input, shape index: {}]
  %s7 = inlined_call_operand.vmem [shape: f32[8,128], index: 7, kind: output, shape index: {0}]
  %s8 = inlined_call_operand.vmem [shape: f32[8,32], index: 8, kind: output, shape index: {1}]
  %9 = xla_tuple %s7, %s8
  %s10 = sld [smem:[#allocation0]]
  $region46: #{encoder_rnn_with_vector.1} parent=0
    _
  %s12 = ssub.s32 1, %s10
  %s13 = scalar_select 0, %s12, %s10
  // Predicated region
  $region2: #{encoder_rnn_with_vector.1} parent=0 // pred_check
    _
  $region3: #{encoder_rnn_with_vector.1} parent=0 // pred_check_branch
    %15 = sbr.rel (0) target = $region5
  $region4: #{encoder_rnn_with_vector.1} parent=0 // pred_region
    _
  $region5: #{encoder_rnn_with_vector.1} parent=0 // pred_fallthru
    _
  // Predicated region
  $region6: #{encoder_rnn_with_vector.1} parent=0 // pred_check
    _
  $region7: #{encoder_rnn_with_vector.1} parent=0 // pred_check_branch
    %17 = sbr.rel (0) target = $region9
  $region8: #{encoder_rnn_with_vector.1} parent=0 // pred_region
    _
  $region9: #{encoder_rnn_with_vector.1} parent=0 // pred_fallthru
    _
  // Predicated region
  $region10: #{encoder_rnn_with_vector.1} parent=0 // pred_check
    _
  $region11: #{encoder_rnn_with_vector.1} parent=0 // pred_check_branch
    %19 = sbr.rel (0) target = $region13
  $region12: #{encoder_rnn_with_vector.1} parent=0 // pred_region
    _
  $region13: #{encoder_rnn_with_vector.1} parent=0 // pred_fallthru
    _
  // Predicated region
  $region14: #{encoder_rnn_with_vector.1} parent=0 // pred_check
    _
  $region15: #{encoder_rnn_with_vector.1} parent=0 // pred_check_branch
    %21 = sbr.rel (0) target = $region17
  $region16: #{encoder_rnn_with_vector.1} parent=0 // pred_region
    _
  $region17: #{encoder_rnn_with_vector.1} parent=0 // pred_fallthru
    _
  // Predicated region
  $region18: #{encoder_rnn_with_vector.1} parent=0 // pred_check
    _
  $region19: #{encoder_rnn_with_vector.1} parent=0 // pred_check_branch
    %23 = sbr.rel (0) target = $region21
  $region20: #{encoder_rnn_with_vector.1} parent=0 // pred_region
    _
  $region21: #{encoder_rnn_with_vector.1} parent=0 // pred_fallthru
    _
  // Predicated region
  $region22: #{encoder_rnn_with_vector.1} parent=0 // pred_check
    _
  $region23: #{encoder_rnn_with_vector.1} parent=0 // pred_check_branch
    %25 = sbr.rel (0) target = $region25
  $region24: #{encoder_rnn_with_vector.1} parent=0 // pred_region
    _
  $region25: #{encoder_rnn_with_vector.1} parent=0 // pred_fallthru
    _
  // Predicated region
  $region26: #{encoder_rnn_with_vector.1} parent=0 // pred_check
    _
  $region27: #{encoder_rnn_with_vector.1} parent=0 // pred_check_branch
    %27 = sbr.rel (0) target = $region29
  $region28: #{encoder_rnn_with_vector.1} parent=0 // pred_region
    _
  $region29: #{encoder_rnn_with_vector.1} parent=0 // pred_fallthru
    _
  %v29 = vld [vmem:[%s0] sm:$0xff]
  %v30 = vld [vmem:[%s0 + $0x8] sm:$0xff]
  %v31 = vld [vmem:[%s0 + $0x10] sm:$0xff]
  %v32 = vld [vmem:[%s0 + $0x18] sm:$0xff]
  %v33 = vld [vmem:[%s0 + $0x20] sm:$0xff]
  %v34 = vld [vmem:[%s0 + $0x28] sm:$0xff]
  %v35 = vld [vmem:[%s0 + $0x30] sm:$0xff]
  %v36 = vld [vmem:[%s0 + $0x38] sm:$0xff]
  %v37 = vld [vmem:[%s1] sm:$0xf]
  %v38 = vld [vmem:[%s1 + $0x4] sm:$0xf]
  %v39 = vld [vmem:[%s3] sm:$0xf]
  %v40 = vld [vmem:[%s3 + $0x4] sm:$0xf]
  %v41 = vld [vmem:[%s3 + $0x8] sm:$0xf]
  %v42 = vld [vmem:[%s3 + $0xc] sm:$0xf]
  %v43 = vld [vmem:[%s2] sm:$0x1]
  %v45 = vlaneseq
  %v46 = vshrl.u32 %v45, 7
  %v47 = vsub.s32 0, %v46
  %v48 = vrot.slane %v43, %v47
  %v50 = vld [vmem:[%s4] sm:$0x1]
  %v52 = vlaneseq
  %v53 = vshrl.u32 %v52, 7
  %v54 = vsub.s32 0, %v53
  %v55 = vrot.slane %v50, %v54
  %v56 = vpack.c.bf16 %v29, %v29
  %v57 = vpack.c.bf16 %v30, %v30
  %v58 = vpack.c.bf16 %v31, %v31
  %v59 = vpack.c.bf16 %v32, %v32
  %v60 = vpack.c.bf16 %v33, %v33
  %v61 = vpack.c.bf16 %v34, %v34
  %v62 = vpack.c.bf16 %v35, %v35
  %v63 = vpack.c.bf16 %v36, %v36
  %v72 = vunpack.c.l.b16 %v56
  %v73 = vunpack.c.l.b16 %v57
  %v74 = vunpack.c.l.b16 %v58
  %v75 = vunpack.c.l.b16 %v59
  %v76 = vunpack.c.l.b16 %v60
  %v77 = vunpack.c.l.b16 %v61
  %v78 = vunpack.c.l.b16 %v62
  %v79 = vunpack.c.l.b16 %v63
  %v80 = vrot.slane %v73, 7
  %vm81 = vcmask 1041409
  %v82 = vsel %vm81, %v80, %v72
  %v83 = vrot.slane %v74, 6
  %vm84 = vcmask 1042434
  %v85 = vsel %vm84, %v83, %v82
  %v86 = vrot.slane %v75, 5
  %vm87 = vcmask 1043459
  %v88 = vsel %vm87, %v86, %v85
  %v89 = vrot.slane %v76, 4
  %vm90 = vcmask 1044484
  %v91 = vsel %vm90, %v89, %v88
  %v92 = vrot.slane %v77, 3
  %vm93 = vcmask 1045509
  %v94 = vsel %vm93, %v92, %v91
  %v95 = vrot.slane %v78, 2
  %vm96 = vcmask 1046534
  %v97 = vsel %vm96, %v95, %v94
  %v98 = vrot.slane %v79, 1
  %vm99 = vcmask 1047559
  %v100 = vsel %vm99, %v98, %v97
  %v101 = vpack.c.b16 %v100, %v100
  %v104 = vunpack.c.l.b16 %v37
  %v105 = vunpack.c.l.b16 %v38
  %v106 = vpack.c.b16 %v105, %v104
  %vm108 = vcmask 130048
  %v110 = vsel %vm108, %v101, 0
  %112 = vmatprep.subr.bf16.mxu0 0
  %113 = vmatpush1.bf16.msra.mxu0 0
  %114 = vmatprep.subr.bf16.mxu0 0
  %115 = vmatpush1.bf16.msra.mxu0 0
  %116 = vmatprep.subr.bf16.mxu0 0
  %117 = vmatpush1.bf16.msra.mxu0 0
  %118 = vmatprep.subr.bf16.mxu0 0
  %119 = vmatpush1.bf16.msra.mxu0 0
  %120 = vmatprep.subr.bf16.mxu0 0
  %121 = vmatpush1.bf16.msra.mxu0 0
  %122 = vmatprep.subr.bf16.mxu0 0
  %123 = vmatpush1.bf16.msra.mxu0 0
  %124 = vmatprep.subr.bf16.mxu0 0
  %125 = vmatpush1.bf16.msra.mxu0 0
  %126 = vmatprep.subr.bf16.mxu0 0
  %127 = vmatpush1.bf16.msra.mxu0 %v106
  %128 = vmatprep.subr.bf16.mxu0 0
  %129 = vmatpush2.bf16.msra.mxu0 0
  %130 = vmatprep.subr.bf16.mxu0 0
  %131 = vmatpush2.bf16.msra.mxu0 0
  %132 = vmatprep.subr.bf16.mxu0 0
  %133 = vmatpush2.bf16.msra.mxu0 0
  %134 = vmatprep.subr.bf16.mxu0 0
  %135 = vmatpush2.bf16.msra.mxu0 0
  %136 = vmatprep.subr.bf16.mxu0 0
  %137 = vmatpush2.bf16.msra.mxu0 0
  %138 = vmatprep.subr.bf16.mxu0 0
  %139 = vmatpush2.bf16.msra.mxu0 0
  %140 = vmatprep.subr.bf16.mxu0 0
  %141 = vmatpush2.bf16.msra.mxu0 0
  %142 = vmatprep.subr.bf16.mxu0 0
  %143 = vmatpush2.bf16.msra.mxu0 0
  %144 = vmatprep.mubr.bf16.mxu0 0
  %145 = vmatmul.mubr.bf16.gmra.mxu0 %v110
  %v146 = vpop.f32.mrf.mxu0
  %v147 = vadd.f32 %v48, %v146
  %v148 = vpop.f32.mrf.mxu0
  %v149 = vpop.f32.mrf.mxu0
  %v150 = vpop.f32.mrf.mxu0
  %151 = vdwg.mxu0
  %v156 = vunpack.c.l.b16 %v39
  %v157 = vunpack.c.l.b16 %v40
  %v158 = vunpack.c.l.b16 %v41
  %v159 = vunpack.c.l.b16 %v42
  %v160 = vpack.c.b16 %v157, %v156
  %v161 = vpack.c.b16 %v159, %v158
  %vm164 = vcmask 261120
  %v166 = vsel %vm164, 0, 0
  %168 = vmatprep.subr.bf16.mxu0 0
  %169 = vmatpush1.bf16.msra.mxu0 0
  %170 = vmatprep.subr.bf16.mxu0 0
  %171 = vmatpush1.bf16.msra.mxu0 0
  %172 = vmatprep.subr.bf16.mxu0 0
  %173 = vmatpush1.bf16.msra.mxu0 0
  %174 = vmatprep.subr.bf16.mxu0 0
  %175 = vmatpush1.bf16.msra.mxu0 0
  %176 = vmatprep.subr.bf16.mxu0 0
  %177 = vmatpush1.bf16.msra.mxu0 0
  %178 = vmatprep.subr.bf16.mxu0 0
  %179 = vmatpush1.bf16.msra.mxu0 0
  %180 = vmatprep.subr.bf16.mxu0 0
  %181 = vmatpush1.bf16.msra.mxu0 %v161
  %182 = vmatprep.subr.bf16.mxu0 0
  %183 = vmatpush1.bf16.msra.mxu0 %v160
  %184 = vmatprep.subr.bf16.mxu0 0
  %185 = vmatpush2.bf16.msra.mxu0 0
  %186 = vmatprep.subr.bf16.mxu0 0
  %187 = vmatpush2.bf16.msra.mxu0 0
  %188 = vmatprep.subr.bf16.mxu0 0
  %189 = vmatpush2.bf16.msra.mxu0 0
  %190 = vmatprep.subr.bf16.mxu0 0
  %191 = vmatpush2.bf16.msra.mxu0 0
  %192 = vmatprep.subr.bf16.mxu0 0
  %193 = vmatpush2.bf16.msra.mxu0 0
  %194 = vmatprep.subr.bf16.mxu0 0
  %195 = vmatpush2.bf16.msra.mxu0 0
  %196 = vmatprep.subr.bf16.mxu0 0
  %197 = vmatpush2.bf16.msra.mxu0 0
  %198 = vmatprep.subr.bf16.mxu0 0
  %199 = vmatpush2.bf16.msra.mxu0 0
  %200 = vmatprep.mubr.bf16.mxu0 0
  %201 = vmatmul.mubr.bf16.gmra.mxu0 %v166
  %v202 = vpop.f32.mrf.mxu0
  %v203 = vadd.f32 0.0, %v202
  %v204 = vpop.f32.mrf.mxu0
  %v205 = vpop.f32.mrf.mxu0
  %v206 = vpop.f32.mrf.mxu0
  %207 = vdwg.mxu0
  %v208 = vadd.f32 %v147, %v203
  %v209 = vxor.u32 %v208, 2147483648
  %v210 = vmul.f32 %v209, 1.442695
  %v211 = vpow.pop %v210
  %v212 = vadd.f32 %v211, 1.0
  %v213 = vrcp.pop %v212
  %v214 = vmul.f32 1.0, %v213
  %215 = vrot.lane.b32.xlu0 %v55, 64
  %v216 = vpop.permute.xlu0 %215
  %v218 = vadd.f32 %v203, %v216
  %220 = vrot.lane.b32.xlu0 %v218, 64
  %v221 = vpop.permute.xlu0 %220
  %v223 = vmul.f32 %v214, %v221
  %225 = vrot.lane.b32.xlu0 %v223, 64
  %v226 = vpop.permute.xlu0 %225
  %v228 = vadd.f32 %v147, %v226
  %v229 = vtanh.pop %v228
  %v230 = vsub.f32 0.0, %v229
  %232 = vrot.lane.b32.xlu0 %v230, 96
  %v233 = vpop.permute.xlu0 %232
  %v235 = vmul.f32 %v214, %v233
  %237 = vrot.lane.b32.xlu0 %v235, 32
  %v238 = vpop.permute.xlu0 %237
  %v240 = vadd.f32 %v229, %v238
  %v241 = vrot.slane %v72, 1
  %v242 = vsel %vm81, %v73, %v241
  %v243 = vrot.slane %v74, 7
  %v244 = vsel %vm84, %v243, %v242
  %v245 = vrot.slane %v75, 6
  %v246 = vsel %vm87, %v245, %v244
  %v247 = vrot.slane %v76, 5
  %v248 = vsel %vm90, %v247, %v246
  %v249 = vrot.slane %v77, 4
  %v250 = vsel %vm93, %v249, %v248
  %v251 = vrot.slane %v78, 3
  %v252 = vsel %vm96, %v251, %v250
  %v253 = vrot.slane %v79, 2
  %v254 = vsel %vm99, %v253, %v252
  %v255 = vpack.c.b16 %v254, %v254
  %v257 = vsel %vm108, %v255, 0
  %259 = vmatprep.subr.bf16.mxu0 0
  %260 = vmatpush1.bf16.msra.mxu0 0
  %261 = vmatprep.subr.bf16.mxu0 0
  %262 = vmatpush1.bf16.msra.mxu0 0
  %263 = vmatprep.subr.bf16.mxu0 0
  %264 = vmatpush1.bf16.msra.mxu0 0
  %265 = vmatprep.subr.bf16.mxu0 0
  %266 = vmatpush1.bf16.msra.mxu0 0
  %267 = vmatprep.subr.bf16.mxu0 0
  %268 = vmatpush1.bf16.msra.mxu0 0
  %269 = vmatprep.subr.bf16.mxu0 0
  %270 = vmatpush1.bf16.msra.mxu0 0
  %271 = vmatprep.subr.bf16.mxu0 0
  %272 = vmatpush1.bf16.msra.mxu0 0
  %273 = vmatprep.subr.bf16.mxu0 0
  %274 = vmatpush1.bf16.msra.mxu0 %v106
  %275 = vmatprep.subr.bf16.mxu0 0
  %276 = vmatpush2.bf16.msra.mxu0 0
  %277 = vmatprep.subr.bf16.mxu0 0
  %278 = vmatpush2.bf16.msra.mxu0 0
  %279 = vmatprep.subr.bf16.mxu0 0
  %280 = vmatpush2.bf16.msra.mxu0 0
  %281 = vmatprep.subr.bf16.mxu0 0
  %282 = vmatpush2.bf16.msra.mxu0 0
  %283 = vmatprep.subr.bf16.mxu0 0
  %284 = vmatpush2.bf16.msra.mxu0 0
  %285 = vmatprep.subr.bf16.mxu0 0
  %286 = vmatpush2.bf16.msra.mxu0 0
  %287 = vmatprep.subr.bf16.mxu0 0
  %288 = vmatpush2.bf16.msra.mxu0 0
  %289 = vmatprep.subr.bf16.mxu0 0
  %290 = vmatpush2.bf16.msra.mxu0 0
  %291 = vmatprep.mubr.bf16.mxu0 0
  %292 = vmatmul.mubr.bf16.gmra.mxu0 %v257
  %v293 = vpop.f32.mrf.mxu0
  %v294 = vadd.f32 %v48, %v293
  %v295 = vpop.f32.mrf.mxu0
  %v296 = vpop.f32.mrf.mxu0
  %v297 = vpop.f32.mrf.mxu0
  %298 = vdwg.mxu0
  %v299 = vpack.c.bf16 %v240, %v240
  %301 = vrot.lane.b32.xlu0 %v299, 64
  %v302 = vpop.permute.xlu0 %301
  %v304 = vsel %vm164, %v302, 0
  %306 = vmatprep.subr.bf16.mxu0 0
  %307 = vmatpush1.bf16.msra.mxu0 0
  %308 = vmatprep.subr.bf16.mxu0 0
  %309 = vmatpush1.bf16.msra.mxu0 0
  %310 = vmatprep.subr.bf16.mxu0 0
  %311 = vmatpush1.bf16.msra.mxu0 0
  %312 = vmatprep.subr.bf16.mxu0 0
  %313 = vmatpush1.bf16.msra.mxu0 0
  %314 = vmatprep.subr.bf16.mxu0 0
  %315 = vmatpush1.bf16.msra.mxu0 0
  %316 = vmatprep.subr.bf16.mxu0 0
  %317 = vmatpush1.bf16.msra.mxu0 0
  %318 = vmatprep.subr.bf16.mxu0 0
  %319 = vmatpush1.bf16.msra.mxu0 %v161
  %320 = vmatprep.subr.bf16.mxu0 0
  %321 = vmatpush1.bf16.msra.mxu0 %v160
  %322 = vmatprep.subr.bf16.mxu0 0
  %323 = vmatpush2.bf16.msra.mxu0 0
  %324 = vmatprep.subr.bf16.mxu0 0
  %325 = vmatpush2.bf16.msra.mxu0 0
  %326 = vmatprep.subr.bf16.mxu0 0
  %327 = vmatpush2.bf16.msra.mxu0 0
  %328 = vmatprep.subr.bf16.mxu0 0
  %329 = vmatpush2.bf16.msra.mxu0 0
  %330 = vmatprep.subr.bf16.mxu0 0
  %331 = vmatpush2.bf16.msra.mxu0 0
  %332 = vmatprep.subr.bf16.mxu0 0
  %333 = vmatpush2.bf16.msra.mxu0 0
  %334 = vmatprep.subr.bf16.mxu0 0
  %335 = vmatpush2.bf16.msra.mxu0 0
  %336 = vmatprep.subr.bf16.mxu0 0
  %337 = vmatpush2.bf16.msra.mxu0 0
  %338 = vmatprep.mubr.bf16.mxu0 0
  %339 = vmatmul.mubr.bf16.gmra.mxu0 %v304
  %v340 = vpop.f32.mrf.mxu0
  %v341 = vadd.f32 0.0, %v340
  %v342 = vpop.f32.mrf.mxu0
  %v343 = vpop.f32.mrf.mxu0
  %v344 = vpop.f32.mrf.mxu0
  %345 = vdwg.mxu0
  %v346 = vadd.f32 %v294, %v341
  %v347 = vxor.u32 %v346, 2147483648
  %v348 = vmul.f32 %v347, 1.442695
  %v349 = vpow.pop %v348
  %v350 = vadd.f32 %v349, 1.0
  %v351 = vrcp.pop %v350
  %v352 = vmul.f32 1.0, %v351
  %v353 = vadd.f32 %v341, %v216
  %355 = vrot.lane.b32.xlu0 %v353, 64
  %v356 = vpop.permute.xlu0 %355
  %v358 = vmul.f32 %v352, %v356
  %360 = vrot.lane.b32.xlu0 %v358, 64
  %v361 = vpop.permute.xlu0 %360
  %v363 = vadd.f32 %v294, %v361
  %v364 = vtanh.pop %v363
  %v365 = vsub.f32 %v240, %v364
  %367 = vrot.lane.b32.xlu0 %v365, 96
  %v368 = vpop.permute.xlu0 %367
  %v370 = vmul.f32 %v352, %v368
  %372 = vrot.lane.b32.xlu0 %v370, 32
  %v373 = vpop.permute.xlu0 %372
  %v375 = vadd.f32 %v364, %v373
  %v376 = vrot.slane %v72, 2
  %v377 = vrot.slane %v73, 1
  %v378 = vsel %vm81, %v377, %v376
  %v379 = vsel %vm84, %v74, %v378
  %v380 = vrot.slane %v75, 7
  %v381 = vsel %vm87, %v380, %v379
  %v382 = vrot.slane %v76, 6
  %v383 = vsel %vm90, %v382, %v381
  %v384 = vrot.slane %v77, 5
  %v385 = vsel %vm93, %v384, %v383
  %v386 = vrot.slane %v78, 4
  %v387 = vsel %vm96, %v386, %v385
  %v388 = vrot.slane %v79, 3
  %v389 = vsel %vm99, %v388, %v387
  %v390 = vpack.c.b16 %v389, %v389
  %v392 = vsel %vm108, %v390, 0
  %394 = vmatprep.subr.bf16.mxu0 0
  %395 = vmatpush1.bf16.msra.mxu0 0
  %396 = vmatprep.subr.bf16.mxu0 0
  %397 = vmatpush1.bf16.msra.mxu0 0
  %398 = vmatprep.subr.bf16.mxu0 0
  %399 = vmatpush1.bf16.msra.mxu0 0
  %400 = vmatprep.subr.bf16.mxu0 0
  %401 = vmatpush1.bf16.msra.mxu0 0
  %402 = vmatprep.subr.bf16.mxu0 0
  %403 = vmatpush1.bf16.msra.mxu0 0
  %404 = vmatprep.subr.bf16.mxu0 0
  %405 = vmatpush1.bf16.msra.mxu0 0
  %406 = vmatprep.subr.bf16.mxu0 0
  %407 = vmatpush1.bf16.msra.mxu0 0
  %408 = vmatprep.subr.bf16.mxu0 0
  %409 = vmatpush1.bf16.msra.mxu0 %v106
  %410 = vmatprep.subr.bf16.mxu0 0
  %411 = vmatpush2.bf16.msra.mxu0 0
  %412 = vmatprep.subr.bf16.mxu0 0
  %413 = vmatpush2.bf16.msra.mxu0 0
  %414 = vmatprep.subr.bf16.mxu0 0
  %415 = vmatpush2.bf16.msra.mxu0 0
  %416 = vmatprep.subr.bf16.mxu0 0
  %417 = vmatpush2.bf16.msra.mxu0 0
  %418 = vmatprep.subr.bf16.mxu0 0
  %419 = vmatpush2.bf16.msra.mxu0 0
  %420 = vmatprep.subr.bf16.mxu0 0
  %421 = vmatpush2.bf16.msra.mxu0 0
  %422 = vmatprep.subr.bf16.mxu0 0
  %423 = vmatpush2.bf16.msra.mxu0 0
  %424 = vmatprep.subr.bf16.mxu0 0
  %425 = vmatpush2.bf16.msra.mxu0 0
  %426 = vmatprep.mubr.bf16.mxu0 0
  %427 = vmatmul.mubr.bf16.gmra.mxu0 %v392
  %v428 = vpop.f32.mrf.mxu0
  %v429 = vadd.f32 %v48, %v428
  %v430 = vpop.f32.mrf.mxu0
  %v431 = vpop.f32.mrf.mxu0
  %v432 = vpop.f32.mrf.mxu0
  %433 = vdwg.mxu0
  %v434 = vpack.c.bf16 %v375, %v375
  %436 = vrot.lane.b32.xlu0 %v434, 64
  %v437 = vpop.permute.xlu0 %436
  %v439 = vsel %vm164, %v437, 0
  %441 = vmatprep.subr.bf16.mxu0 0
  %442 = vmatpush1.bf16.msra.mxu0 0
  %443 = vmatprep.subr.bf16.mxu0 0
  %444 = vmatpush1.bf16.msra.mxu0 0
  %445 = vmatprep.subr.bf16.mxu0 0
  %446 = vmatpush1.bf16.msra.mxu0 0
  %447 = vmatprep.subr.bf16.mxu0 0
  %448 = vmatpush1.bf16.msra.mxu0 0
  %449 = vmatprep.subr.bf16.mxu0 0
  %450 = vmatpush1.bf16.msra.mxu0 0
  %451 = vmatprep.subr.bf16.mxu0 0
  %452 = vmatpush1.bf16.msra.mxu0 0
  %453 = vmatprep.subr.bf16.mxu0 0
  %454 = vmatpush1.bf16.msra.mxu0 %v161
  %455 = vmatprep.subr.bf16.mxu0 0
  %456 = vmatpush1.bf16.msra.mxu0 %v160
  %457 = vmatprep.subr.bf16.mxu0 0
  %458 = vmatpush2.bf16.msra.mxu0 0
  %459 = vmatprep.subr.bf16.mxu0 0
  %460 = vmatpush2.bf16.msra.mxu0 0
  %461 = vmatprep.subr.bf16.mxu0 0
  %462 = vmatpush2.bf16.msra.mxu0 0
  %463 = vmatprep.subr.bf16.mxu0 0
  %464 = vmatpush2.bf16.msra.mxu0 0
  %465 = vmatprep.subr.bf16.mxu0 0
  %466 = vmatpush2.bf16.msra.mxu0 0
  %467 = vmatprep.subr.bf16.mxu0 0
  %468 = vmatpush2.bf16.msra.mxu0 0
  %469 = vmatprep.subr.bf16.mxu0 0
  %470 = vmatpush2.bf16.msra.mxu0 0
  %471 = vmatprep.subr.bf16.mxu0 0
  %472 = vmatpush2.bf16.msra.mxu0 0
  %473 = vmatprep.mubr.bf16.mxu0 0
  %474 = vmatmul.mubr.bf16.gmra.mxu0 %v439
  %v475 = vpop.f32.mrf.mxu0
  %v476 = vadd.f32 0.0, %v475
  %v477 = vpop.f32.mrf.mxu0
  %v478 = vpop.f32.mrf.mxu0
  %v479 = vpop.f32.mrf.mxu0
  %480 = vdwg.mxu0
  %v481 = vadd.f32 %v429, %v476
  %v482 = vxor.u32 %v481, 2147483648
  %v483 = vmul.f32 %v482, 1.442695
  %v484 = vpow.pop %v483
  %v485 = vadd.f32 %v484, 1.0
  %v486 = vrcp.pop %v485
  %v487 = vmul.f32 1.0, %v486
  %v488 = vadd.f32 %v476, %v216
  %490 = vrot.lane.b32.xlu0 %v488, 64
  %v491 = vpop.permute.xlu0 %490
  %v493 = vmul.f32 %v487, %v491
  %495 = vrot.lane.b32.xlu0 %v493, 64
  %v496 = vpop.permute.xlu0 %495
  %v498 = vadd.f32 %v429, %v496
  %v499 = vtanh.pop %v498
  %v500 = vsub.f32 %v375, %v499
  %502 = vrot.lane.b32.xlu0 %v500, 96
  %v503 = vpop.permute.xlu0 %502
  %v505 = vmul.f32 %v487, %v503
  %507 = vrot.lane.b32.xlu0 %v505, 32
  %v508 = vpop.permute.xlu0 %507
  %v510 = vadd.f32 %v499, %v508
  %v511 = vrot.slane %v72, 3
  %v512 = vrot.slane %v73, 2
  %v513 = vsel %vm81, %v512, %v511
  %v514 = vrot.slane %v74, 1
  %v515 = vsel %vm84, %v514, %v513
  %v516 = vsel %vm87, %v75, %v515
  %v517 = vrot.slane %v76, 7
  %v518 = vsel %vm90, %v517, %v516
  %v519 = vrot.slane %v77, 6
  %v520 = vsel %vm93, %v519, %v518
  %v521 = vrot.slane %v78, 5
  %v522 = vsel %vm96, %v521, %v520
  %v523 = vrot.slane %v79, 4
  %v524 = vsel %vm99, %v523, %v522
  %v525 = vpack.c.b16 %v524, %v524
  %v527 = vsel %vm108, %v525, 0
  %529 = vmatprep.subr.bf16.mxu0 0
  %530 = vmatpush1.bf16.msra.mxu0 0
  %531 = vmatprep.subr.bf16.mxu0 0
  %532 = vmatpush1.bf16.msra.mxu0 0
  %533 = vmatprep.subr.bf16.mxu0 0
  %534 = vmatpush1.bf16.msra.mxu0 0
  %535 = vmatprep.subr.bf16.mxu0 0
  %536 = vmatpush1.bf16.msra.mxu0 0
  %537 = vmatprep.subr.bf16.mxu0 0
  %538 = vmatpush1.bf16.msra.mxu0 0
  %539 = vmatprep.subr.bf16.mxu0 0
  %540 = vmatpush1.bf16.msra.mxu0 0
  %541 = vmatprep.subr.bf16.mxu0 0
  %542 = vmatpush1.bf16.msra.mxu0 0
  %543 = vmatprep.subr.bf16.mxu0 0
  %544 = vmatpush1.bf16.msra.mxu0 %v106
  %545 = vmatprep.subr.bf16.mxu0 0
  %546 = vmatpush2.bf16.msra.mxu0 0
  %547 = vmatprep.subr.bf16.mxu0 0
  %548 = vmatpush2.bf16.msra.mxu0 0
  %549 = vmatprep.subr.bf16.mxu0 0
  %550 = vmatpush2.bf16.msra.mxu0 0
  %551 = vmatprep.subr.bf16.mxu0 0
  %552 = vmatpush2.bf16.msra.mxu0 0
  %553 = vmatprep.subr.bf16.mxu0 0
  %554 = vmatpush2.bf16.msra.mxu0 0
  %555 = vmatprep.subr.bf16.mxu0 0
  %556 = vmatpush2.bf16.msra.mxu0 0
  %557 = vmatprep.subr.bf16.mxu0 0
  %558 = vmatpush2.bf16.msra.mxu0 0
  %559 = vmatprep.subr.bf16.mxu0 0
  %560 = vmatpush2.bf16.msra.mxu0 0
  %561 = vmatprep.mubr.bf16.mxu0 0
  %562 = vmatmul.mubr.bf16.gmra.mxu0 %v527
  %v563 = vpop.f32.mrf.mxu0
  %v564 = vadd.f32 %v48, %v563
  %v565 = vpop.f32.mrf.mxu0
  %v566 = vpop.f32.mrf.mxu0
  %v567 = vpop.f32.mrf.mxu0
  %568 = vdwg.mxu0
  %v569 = vpack.c.bf16 %v510, %v510
  %571 = vrot.lane.b32.xlu0 %v569, 64
  %v572 = vpop.permute.xlu0 %571
  %v574 = vsel %vm164, %v572, 0
  %576 = vmatprep.subr.bf16.mxu0 0
  %577 = vmatpush1.bf16.msra.mxu0 0
  %578 = vmatprep.subr.bf16.mxu0 0
  %579 = vmatpush1.bf16.msra.mxu0 0
  %580 = vmatprep.subr.bf16.mxu0 0
  %581 = vmatpush1.bf16.msra.mxu0 0
  %582 = vmatprep.subr.bf16.mxu0 0
  %583 = vmatpush1.bf16.msra.mxu0 0
  %584 = vmatprep.subr.bf16.mxu0 0
  %585 = vmatpush1.bf16.msra.mxu0 0
  %586 = vmatprep.subr.bf16.mxu0 0
  %587 = vmatpush1.bf16.msra.mxu0 0
  %588 = vmatprep.subr.bf16.mxu0 0
  %589 = vmatpush1.bf16.msra.mxu0 %v161
  %590 = vmatprep.subr.bf16.mxu0 0
  %591 = vmatpush1.bf16.msra.mxu0 %v160
  %592 = vmatprep.subr.bf16.mxu0 0
  %593 = vmatpush2.bf16.msra.mxu0 0
  %594 = vmatprep.subr.bf16.mxu0 0
  %595 = vmatpush2.bf16.msra.mxu0 0
  %596 = vmatprep.subr.bf16.mxu0 0
  %597 = vmatpush2.bf16.msra.mxu0 0
  %598 = vmatprep.subr.bf16.mxu0 0
  %599 = vmatpush2.bf16.msra.mxu0 0
  %600 = vmatprep.subr.bf16.mxu0 0
  %601 = vmatpush2.bf16.msra.mxu0 0
  %602 = vmatprep.subr.bf16.mxu0 0
  %603 = vmatpush2.bf16.msra.mxu0 0
  %604 = vmatprep.subr.bf16.mxu0 0
  %605 = vmatpush2.bf16.msra.mxu0 0
  %606 = vmatprep.subr.bf16.mxu0 0
  %607 = vmatpush2.bf16.msra.mxu0 0
  %608 = vmatprep.mubr.bf16.mxu0 0
  %609 = vmatmul.mubr.bf16.gmra.mxu0 %v574
  %v610 = vpop.f32.mrf.mxu0
  %v611 = vadd.f32 0.0, %v610
  %v612 = vpop.f32.mrf.mxu0
  %v613 = vpop.f32.mrf.mxu0
  %v614 = vpop.f32.mrf.mxu0
  %615 = vdwg.mxu0
  %v616 = vadd.f32 %v564, %v611
  %v617 = vxor.u32 %v616, 2147483648
  %v618 = vmul.f32 %v617, 1.442695
  %v619 = vpow.pop %v618
  %v620 = vadd.f32 %v619, 1.0
  %v621 = vrcp.pop %v620
  %v622 = vmul.f32 1.0, %v621
  %v623 = vadd.f32 %v611, %v216
  %625 = vrot.lane.b32.xlu0 %v623, 64
  %v626 = vpop.permute.xlu0 %625
  %v628 = vmul.f32 %v622, %v626
  %630 = vrot.lane.b32.xlu0 %v628, 64
  %v631 = vpop.permute.xlu0 %630
  %v633 = vadd.f32 %v564, %v631
  %v634 = vtanh.pop %v633
  %v635 = vsub.f32 %v510, %v634
  %637 = vrot.lane.b32.xlu0 %v635, 96
  %v638 = vpop.permute.xlu0 %637
  %v640 = vmul.f32 %v622, %v638
  %642 = vrot.lane.b32.xlu0 %v640, 32
  %v643 = vpop.permute.xlu0 %642
  %v645 = vadd.f32 %v634, %v643
  %v646 = vrot.slane %v72, 4
  %v647 = vrot.slane %v73, 3
  %v648 = vsel %vm81, %v647, %v646
  %v649 = vrot.slane %v74, 2
  %v650 = vsel %vm84, %v649, %v648
  %v651 = vrot.slane %v75, 1
  %v652 = vsel %vm87, %v651, %v650
  %v653 = vsel %vm90, %v76, %v652
  %v654 = vrot.slane %v77, 7
  %v655 = vsel %vm93, %v654, %v653
  %v656 = vrot.slane %v78, 6
  %v657 = vsel %vm96, %v656, %v655
  %v658 = vrot.slane %v79, 5
  %v659 = vsel %vm99, %v658, %v657
  %v660 = vpack.c.b16 %v659, %v659
  %v662 = vsel %vm108, %v660, 0
  %664 = vmatprep.subr.bf16.mxu0 0
  %665 = vmatpush1.bf16.msra.mxu0 0
  %666 = vmatprep.subr.bf16.mxu0 0
  %667 = vmatpush1.bf16.msra.mxu0 0
  %668 = vmatprep.subr.bf16.mxu0 0
  %669 = vmatpush1.bf16.msra.mxu0 0
  %670 = vmatprep.subr.bf16.mxu0 0
  %671 = vmatpush1.bf16.msra.mxu0 0
  %672 = vmatprep.subr.bf16.mxu0 0
  %673 = vmatpush1.bf16.msra.mxu0 0
  %674 = vmatprep.subr.bf16.mxu0 0
  %675 = vmatpush1.bf16.msra.mxu0 0
  %676 = vmatprep.subr.bf16.mxu0 0
  %677 = vmatpush1.bf16.msra.mxu0 0
  %678 = vmatprep.subr.bf16.mxu0 0
  %679 = vmatpush1.bf16.msra.mxu0 %v106
  %680 = vmatprep.subr.bf16.mxu0 0
  %681 = vmatpush2.bf16.msra.mxu0 0
  %682 = vmatprep.subr.bf16.mxu0 0
  %683 = vmatpush2.bf16.msra.mxu0 0
  %684 = vmatprep.subr.bf16.mxu0 0
  %685 = vmatpush2.bf16.msra.mxu0 0
  %686 = vmatprep.subr.bf16.mxu0 0
  %687 = vmatpush2.bf16.msra.mxu0 0
  %688 = vmatprep.subr.bf16.mxu0 0
  %689 = vmatpush2.bf16.msra.mxu0 0
  %690 = vmatprep.subr.bf16.mxu0 0
  %691 = vmatpush2.bf16.msra.mxu0 0
  %692 = vmatprep.subr.bf16.mxu0 0
  %693 = vmatpush2.bf16.msra.mxu0 0
  %694 = vmatprep.subr.bf16.mxu0 0
  %695 = vmatpush2.bf16.msra.mxu0 0
  %696 = vmatprep.mubr.bf16.mxu0 0
  %697 = vmatmul.mubr.bf16.gmra.mxu0 %v662
  %v698 = vpop.f32.mrf.mxu0
  %v699 = vadd.f32 %v48, %v698
  %v700 = vpop.f32.mrf.mxu0
  %v701 = vpop.f32.mrf.mxu0
  %v702 = vpop.f32.mrf.mxu0
  %703 = vdwg.mxu0
  %v704 = vpack.c.bf16 %v645, %v645
  %706 = vrot.lane.b32.xlu0 %v704, 64
  %v707 = vpop.permute.xlu0 %706
  %v709 = vsel %vm164, %v707, 0
  %711 = vmatprep.subr.bf16.mxu0 0
  %712 = vmatpush1.bf16.msra.mxu0 0
  %713 = vmatprep.subr.bf16.mxu0 0
  %714 = vmatpush1.bf16.msra.mxu0 0
  %715 = vmatprep.subr.bf16.mxu0 0
  %716 = vmatpush1.bf16.msra.mxu0 0
  %717 = vmatprep.subr.bf16.mxu0 0
  %718 = vmatpush1.bf16.msra.mxu0 0
  %719 = vmatprep.subr.bf16.mxu0 0
  %720 = vmatpush1.bf16.msra.mxu0 0
  %721 = vmatprep.subr.bf16.mxu0 0
  %722 = vmatpush1.bf16.msra.mxu0 0
  %723 = vmatprep.subr.bf16.mxu0 0
  %724 = vmatpush1.bf16.msra.mxu0 %v161
  %725 = vmatprep.subr.bf16.mxu0 0
  %726 = vmatpush1.bf16.msra.mxu0 %v160
  %727 = vmatprep.subr.bf16.mxu0 0
  %728 = vmatpush2.bf16.msra.mxu0 0
  %729 = vmatprep.subr.bf16.mxu0 0
  %730 = vmatpush2.bf16.msra.mxu0 0
  %731 = vmatprep.subr.bf16.mxu0 0
  %732 = vmatpush2.bf16.msra.mxu0 0
  %733 = vmatprep.subr.bf16.mxu0 0
  %734 = vmatpush2.bf16.msra.mxu0 0
  %735 = vmatprep.subr.bf16.mxu0 0
  %736 = vmatpush2.bf16.msra.mxu0 0
  %737 = vmatprep.subr.bf16.mxu0 0
  %738 = vmatpush2.bf16.msra.mxu0 0
  %739 = vmatprep.subr.bf16.mxu0 0
  %740 = vmatpush2.bf16.msra.mxu0 0
  %741 = vmatprep.subr.bf16.mxu0 0
  %742 = vmatpush2.bf16.msra.mxu0 0
  %743 = vmatprep.mubr.bf16.mxu0 0
  %744 = vmatmul.mubr.bf16.gmra.mxu0 %v709
  %v745 = vpop.f32.mrf.mxu0
  %v746 = vadd.f32 0.0, %v745
  %v747 = vpop.f32.mrf.mxu0
  %v748 = vpop.f32.mrf.mxu0
  %v749 = vpop.f32.mrf.mxu0
  %750 = vdwg.mxu0
  %v751 = vadd.f32 %v699, %v746
  %v752 = vxor.u32 %v751, 2147483648
  %v753 = vmul.f32 %v752, 1.442695
  %v754 = vpow.pop %v753
  %v755 = vadd.f32 %v754, 1.0
  %v756 = vrcp.pop %v755
  %v757 = vmul.f32 1.0, %v756
  %v758 = vadd.f32 %v746, %v216
  %760 = vrot.lane.b32.xlu0 %v758, 64
  %v761 = vpop.permute.xlu0 %760
  %v763 = vmul.f32 %v757, %v761
  %765 = vrot.lane.b32.xlu0 %v763, 64
  %v766 = vpop.permute.xlu0 %765
  %v768 = vadd.f32 %v699, %v766
  %v769 = vtanh.pop %v768
  %v770 = vsub.f32 %v645, %v769
  %772 = vrot.lane.b32.xlu0 %v770, 96
  %v773 = vpop.permute.xlu0 %772
  %v775 = vmul.f32 %v757, %v773
  %777 = vrot.lane.b32.xlu0 %v775, 32
  %v778 = vpop.permute.xlu0 %777
  %v780 = vadd.f32 %v769, %v778
  %v781 = vrot.slane %v72, 5
  %v782 = vrot.slane %v73, 4
  %v783 = vsel %vm81, %v782, %v781
  %v784 = vrot.slane %v74, 3
  %v785 = vsel %vm84, %v784, %v783
  %v786 = vrot.slane %v75, 2
  %v787 = vsel %vm87, %v786, %v785
  %v788 = vrot.slane %v76, 1
  %v789 = vsel %vm90, %v788, %v787
  %v790 = vsel %vm93, %v77, %v789
  %v791 = vrot.slane %v78, 7
  %v792 = vsel %vm96, %v791, %v790
  %v793 = vrot.slane %v79, 6
  %v794 = vsel %vm99, %v793, %v792
  %v795 = vpack.c.b16 %v794, %v794
  %v797 = vsel %vm108, %v795, 0
  %799 = vmatprep.subr.bf16.mxu0 0
  %800 = vmatpush1.bf16.msra.mxu0 0
  %801 = vmatprep.subr.bf16.mxu0 0
  %802 = vmatpush1.bf16.msra.mxu0 0
  %803 = vmatprep.subr.bf16.mxu0 0
  %804 = vmatpush1.bf16.msra.mxu0 0
  %805 = vmatprep.subr.bf16.mxu0 0
  %806 = vmatpush1.bf16.msra.mxu0 0
  %807 = vmatprep.subr.bf16.mxu0 0
  %808 = vmatpush1.bf16.msra.mxu0 0
  %809 = vmatprep.subr.bf16.mxu0 0
  %810 = vmatpush1.bf16.msra.mxu0 0
  %811 = vmatprep.subr.bf16.mxu0 0
  %812 = vmatpush1.bf16.msra.mxu0 0
  %813 = vmatprep.subr.bf16.mxu0 0
  %814 = vmatpush1.bf16.msra.mxu0 %v106
  %815 = vmatprep.subr.bf16.mxu0 0
  %816 = vmatpush2.bf16.msra.mxu0 0
  %817 = vmatprep.subr.bf16.mxu0 0
  %818 = vmatpush2.bf16.msra.mxu0 0
  %819 = vmatprep.subr.bf16.mxu0 0
  %820 = vmatpush2.bf16.msra.mxu0 0
  %821 = vmatprep.subr.bf16.mxu0 0
  %822 = vmatpush2.bf16.msra.mxu0 0
  %823 = vmatprep.subr.bf16.mxu0 0
  %824 = vmatpush2.bf16.msra.mxu0 0
  %825 = vmatprep.subr.bf16.mxu0 0
  %826 = vmatpush2.bf16.msra.mxu0 0
  %827 = vmatprep.subr.bf16.mxu0 0
  %828 = vmatpush2.bf16.msra.mxu0 0
  %829 = vmatprep.subr.bf16.mxu0 0
  %830 = vmatpush2.bf16.msra.mxu0 0
  %831 = vmatprep.mubr.bf16.mxu0 0
  %832 = vmatmul.mubr.bf16.gmra.mxu0 %v797
  %v833 = vpop.f32.mrf.mxu0
  %v834 = vadd.f32 %v48, %v833
  %v835 = vpop.f32.mrf.mxu0
  %v836 = vpop.f32.mrf.mxu0
  %v837 = vpop.f32.mrf.mxu0
  %838 = vdwg.mxu0
  %v839 = vpack.c.bf16 %v780, %v780
  %841 = vrot.lane.b32.xlu0 %v839, 64
  %v842 = vpop.permute.xlu0 %841
  %v844 = vsel %vm164, %v842, 0
  %846 = vmatprep.subr.bf16.mxu0 0
  %847 = vmatpush1.bf16.msra.mxu0 0
  %848 = vmatprep.subr.bf16.mxu0 0
  %849 = vmatpush1.bf16.msra.mxu0 0
  %850 = vmatprep.subr.bf16.mxu0 0
  %851 = vmatpush1.bf16.msra.mxu0 0
  %852 = vmatprep.subr.bf16.mxu0 0
  %853 = vmatpush1.bf16.msra.mxu0 0
  %854 = vmatprep.subr.bf16.mxu0 0
  %855 = vmatpush1.bf16.msra.mxu0 0
  %856 = vmatprep.subr.bf16.mxu0 0
  %857 = vmatpush1.bf16.msra.mxu0 0
  %858 = vmatprep.subr.bf16.mxu0 0
  %859 = vmatpush1.bf16.msra.mxu0 %v161
  %860 = vmatprep.subr.bf16.mxu0 0
  %861 = vmatpush1.bf16.msra.mxu0 %v160
  %862 = vmatprep.subr.bf16.mxu0 0
  %863 = vmatpush2.bf16.msra.mxu0 0
  %864 = vmatprep.subr.bf16.mxu0 0
  %865 = vmatpush2.bf16.msra.mxu0 0
  %866 = vmatprep.subr.bf16.mxu0 0
  %867 = vmatpush2.bf16.msra.mxu0 0
  %868 = vmatprep.subr.bf16.mxu0 0
  %869 = vmatpush2.bf16.msra.mxu0 0
  %870 = vmatprep.subr.bf16.mxu0 0
  %871 = vmatpush2.bf16.msra.mxu0 0
  %872 = vmatprep.subr.bf16.mxu0 0
  %873 = vmatpush2.bf16.msra.mxu0 0
  %874 = vmatprep.subr.bf16.mxu0 0
  %875 = vmatpush2.bf16.msra.mxu0 0
  %876 = vmatprep.subr.bf16.mxu0 0
  %877 = vmatpush2.bf16.msra.mxu0 0
  %878 = vmatprep.mubr.bf16.mxu0 0
  %879 = vmatmul.mubr.bf16.gmra.mxu0 %v844
  %v880 = vpop.f32.mrf.mxu0
  %v881 = vadd.f32 0.0, %v880
  %v882 = vpop.f32.mrf.mxu0
  %v883 = vpop.f32.mrf.mxu0
  %v884 = vpop.f32.mrf.mxu0
  %885 = vdwg.mxu0
  %v886 = vadd.f32 %v834, %v881
  %v887 = vxor.u32 %v886, 2147483648
  %v888 = vmul.f32 %v887, 1.442695
  %v889 = vpow.pop %v888
  %v890 = vadd.f32 %v889, 1.0
  %v891 = vrcp.pop %v890
  %v892 = vmul.f32 1.0, %v891
  %v893 = vadd.f32 %v881, %v216
  %895 = vrot.lane.b32.xlu0 %v893, 64
  %v896 = vpop.permute.xlu0 %895
  %v898 = vmul.f32 %v892, %v896
  %900 = vrot.lane.b32.xlu0 %v898, 64
  %v901 = vpop.permute.xlu0 %900
  %v903 = vadd.f32 %v834, %v901
  %v904 = vtanh.pop %v903
  %v905 = vsub.f32 %v780, %v904
  %907 = vrot.lane.b32.xlu0 %v905, 96
  %v908 = vpop.permute.xlu0 %907
  %v910 = vmul.f32 %v892, %v908
  %912 = vrot.lane.b32.xlu0 %v910, 32
  %v913 = vpop.permute.xlu0 %912
  %v915 = vadd.f32 %v904, %v913
  %v916 = vrot.slane %v72, 6
  %v917 = vrot.slane %v73, 5
  %v918 = vsel %vm81, %v917, %v916
  %v919 = vrot.slane %v74, 4
  %v920 = vsel %vm84, %v919, %v918
  %v921 = vrot.slane %v75, 3
  %v922 = vsel %vm87, %v921, %v920
  %v923 = vrot.slane %v76, 2
  %v924 = vsel %vm90, %v923, %v922
  %v925 = vrot.slane %v77, 1
  %v926 = vsel %vm93, %v925, %v924
  %v927 = vsel %vm96, %v78, %v926
  %v928 = vrot.slane %v79, 7
  %v929 = vsel %vm99, %v928, %v927
  %v930 = vpack.c.b16 %v929, %v929
  %v932 = vsel %vm108, %v930, 0
  %934 = vmatprep.subr.bf16.mxu0 0
  %935 = vmatpush1.bf16.msra.mxu0 0
  %936 = vmatprep.subr.bf16.mxu0 0
  %937 = vmatpush1.bf16.msra.mxu0 0
  %938 = vmatprep.subr.bf16.mxu0 0
  %939 = vmatpush1.bf16.msra.mxu0 0
  %940 = vmatprep.subr.bf16.mxu0 0
  %941 = vmatpush1.bf16.msra.mxu0 0
  %942 = vmatprep.subr.bf16.mxu0 0
  %943 = vmatpush1.bf16.msra.mxu0 0
  %944 = vmatprep.subr.bf16.mxu0 0
  %945 = vmatpush1.bf16.msra.mxu0 0
  %946 = vmatprep.subr.bf16.mxu0 0
  %947 = vmatpush1.bf16.msra.mxu0 0
  %948 = vmatprep.subr.bf16.mxu0 0
  %949 = vmatpush1.bf16.msra.mxu0 %v106
  %950 = vmatprep.subr.bf16.mxu0 0
  %951 = vmatpush2.bf16.msra.mxu0 0
  %952 = vmatprep.subr.bf16.mxu0 0
  %953 = vmatpush2.bf16.msra.mxu0 0
  %954 = vmatprep.subr.bf16.mxu0 0
  %955 = vmatpush2.bf16.msra.mxu0 0
  %956 = vmatprep.subr.bf16.mxu0 0
  %957 = vmatpush2.bf16.msra.mxu0 0
  %958 = vmatprep.subr.bf16.mxu0 0
  %959 = vmatpush2.bf16.msra.mxu0 0
  %960 = vmatprep.subr.bf16.mxu0 0
  %961 = vmatpush2.bf16.msra.mxu0 0
  %962 = vmatprep.subr.bf16.mxu0 0
  %963 = vmatpush2.bf16.msra.mxu0 0
  %964 = vmatprep.subr.bf16.mxu0 0
  %965 = vmatpush2.bf16.msra.mxu0 0
  %966 = vmatprep.mubr.bf16.mxu0 0
  %967 = vmatmul.mubr.bf16.gmra.mxu0 %v932
  %v968 = vpop.f32.mrf.mxu0
  %v969 = vadd.f32 %v48, %v968
  %v970 = vpop.f32.mrf.mxu0
  %v971 = vpop.f32.mrf.mxu0
  %v972 = vpop.f32.mrf.mxu0
  %973 = vdwg.mxu0
  %v974 = vpack.c.bf16 %v915, %v915
  %976 = vrot.lane.b32.xlu0 %v974, 64
  %v977 = vpop.permute.xlu0 %976
  %v979 = vsel %vm164, %v977, 0
  %981 = vmatprep.subr.bf16.mxu0 0
  %982 = vmatpush1.bf16.msra.mxu0 0
  %983 = vmatprep.subr.bf16.mxu0 0
  %984 = vmatpush1.bf16.msra.mxu0 0
  %985 = vmatprep.subr.bf16.mxu0 0
  %986 = vmatpush1.bf16.msra.mxu0 0
  %987 = vmatprep.subr.bf16.mxu0 0
  %988 = vmatpush1.bf16.msra.mxu0 0
  %989 = vmatprep.subr.bf16.mxu0 0
  %990 = vmatpush1.bf16.msra.mxu0 0
  %991 = vmatprep.subr.bf16.mxu0 0
  %992 = vmatpush1.bf16.msra.mxu0 0
  %993 = vmatprep.subr.bf16.mxu0 0
  %994 = vmatpush1.bf16.msra.mxu0 %v161
  %995 = vmatprep.subr.bf16.mxu0 0
  %996 = vmatpush1.bf16.msra.mxu0 %v160
  %997 = vmatprep.subr.bf16.mxu0 0
  %998 = vmatpush2.bf16.msra.mxu0 0
  %999 = vmatprep.subr.bf16.mxu0 0
  %1000 = vmatpush2.bf16.msra.mxu0 0
  %1001 = vmatprep.subr.bf16.mxu0 0
  %1002 = vmatpush2.bf16.msra.mxu0 0
  %1003 = vmatprep.subr.bf16.mxu0 0
  %1004 = vmatpush2.bf16.msra.mxu0 0
  %1005 = vmatprep.subr.bf16.mxu0 0
  %1006 = vmatpush2.bf16.msra.mxu0 0
  %1007 = vmatprep.subr.bf16.mxu0 0
  %1008 = vmatpush2.bf16.msra.mxu0 0
  %1009 = vmatprep.subr.bf16.mxu0 0
  %1010 = vmatpush2.bf16.msra.mxu0 0
  %1011 = vmatprep.subr.bf16.mxu0 0
  %1012 = vmatpush2.bf16.msra.mxu0 0
  %1013 = vmatprep.mubr.bf16.mxu0 0
  %1014 = vmatmul.mubr.bf16.gmra.mxu0 %v979
  %v1015 = vpop.f32.mrf.mxu0
  %v1016 = vadd.f32 0.0, %v1015
  %v1017 = vpop.f32.mrf.mxu0
  %v1018 = vpop.f32.mrf.mxu0
  %v1019 = vpop.f32.mrf.mxu0
  %1020 = vdwg.mxu0
  %v1021 = vadd.f32 %v969, %v1016
  %v1022 = vxor.u32 %v1021, 2147483648
  %v1023 = vmul.f32 %v1022, 1.442695
  %v1024 = vpow.pop %v1023
  %v1025 = vadd.f32 %v1024, 1.0
  %v1026 = vrcp.pop %v1025
  %v1027 = vmul.f32 1.0, %v1026
  %v1028 = vadd.f32 %v1016, %v216
  %1030 = vrot.lane.b32.xlu0 %v1028, 64
  %v1031 = vpop.permute.xlu0 %1030
  %v1033 = vmul.f32 %v1027, %v1031
  %1035 = vrot.lane.b32.xlu0 %v1033, 64
  %v1036 = vpop.permute.xlu0 %1035
  %v1038 = vadd.f32 %v969, %v1036
  %v1039 = vtanh.pop %v1038
  %v1040 = vsub.f32 %v915, %v1039
  %1042 = vrot.lane.b32.xlu0 %v1040, 96
  %v1043 = vpop.permute.xlu0 %1042
  %v1045 = vmul.f32 %v1027, %v1043
  %1047 = vrot.lane.b32.xlu0 %v1045, 32
  %v1048 = vpop.permute.xlu0 %1047
  %v1050 = vadd.f32 %v1039, %v1048
  %v1051 = vrot.slane %v72, 7
  %v1052 = vrot.slane %v73, 6
  %v1053 = vsel %vm81, %v1052, %v1051
  %v1054 = vrot.slane %v74, 5
  %v1055 = vsel %vm84, %v1054, %v1053
  %v1056 = vrot.slane %v75, 4
  %v1057 = vsel %vm87, %v1056, %v1055
  %v1058 = vrot.slane %v76, 3
  %v1059 = vsel %vm90, %v1058, %v1057
  %v1060 = vrot.slane %v77, 2
  %v1061 = vsel %vm93, %v1060, %v1059
  %v1062 = vrot.slane %v78, 1
  %v1063 = vsel %vm96, %v1062, %v1061
  %v1064 = vsel %vm99, %v79, %v1063
  %v1065 = vpack.c.b16 %v1064, %v1064
  %v1067 = vsel %vm108, %v1065, 0
  %1069 = vmatprep.subr.bf16.mxu0 0
  %1070 = vmatpush1.bf16.msra.mxu0 0
  %1071 = vmatprep.subr.bf16.mxu0 0
  %1072 = vmatpush1.bf16.msra.mxu0 0
  %1073 = vmatprep.subr.bf16.mxu0 0
  %1074 = vmatpush1.bf16.msra.mxu0 0
  %1075 = vmatprep.subr.bf16.mxu0 0
  %1076 = vmatpush1.bf16.msra.mxu0 0
  %1077 = vmatprep.subr.bf16.mxu0 0
  %1078 = vmatpush1.bf16.msra.mxu0 0
  %1079 = vmatprep.subr.bf16.mxu0 0
  %1080 = vmatpush1.bf16.msra.mxu0 0
  %1081 = vmatprep.subr.bf16.mxu0 0
  %1082 = vmatpush1.bf16.msra.mxu0 0
  %1083 = vmatprep.subr.bf16.mxu0 0
  %1084 = vmatpush1.bf16.msra.mxu0 %v106
  %1085 = vmatprep.subr.bf16.mxu0 0
  %1086 = vmatpush2.bf16.msra.mxu0 0
  %1087 = vmatprep.subr.bf16.mxu0 0
  %1088 = vmatpush2.bf16.msra.mxu0 0
  %1089 = vmatprep.subr.bf16.mxu0 0
  %1090 = vmatpush2.bf16.msra.mxu0 0
  %1091 = vmatprep.subr.bf16.mxu0 0
  %1092 = vmatpush2.bf16.msra.mxu0 0
  %1093 = vmatprep.subr.bf16.mxu0 0
  %1094 = vmatpush2.bf16.msra.mxu0 0
  %1095 = vmatprep.subr.bf16.mxu0 0
  %1096 = vmatpush2.bf16.msra.mxu0 0
  %1097 = vmatprep.subr.bf16.mxu0 0
  %1098 = vmatpush2.bf16.msra.mxu0 0
  %1099 = vmatprep.subr.bf16.mxu0 0
  %1100 = vmatpush2.bf16.msra.mxu0 0
  %1101 = vmatprep.mubr.bf16.mxu0 0
  %1102 = vmatmul.mubr.bf16.gmra.mxu0 %v1067
  %v1103 = vpop.f32.mrf.mxu0
  %v1104 = vadd.f32 %v48, %v1103
  %v1105 = vpop.f32.mrf.mxu0
  %v1106 = vpop.f32.mrf.mxu0
  %v1107 = vpop.f32.mrf.mxu0
  %1108 = vdwg.mxu0
  %v1109 = vpack.c.bf16 %v1050, %v1050
  %1111 = vrot.lane.b32.xlu0 %v1109, 64
  %v1112 = vpop.permute.xlu0 %1111
  %v1114 = vsel %vm164, %v1112, 0
  %1116 = vmatprep.subr.bf16.mxu0 0
  %1117 = vmatpush1.bf16.msra.mxu0 0
  %1118 = vmatprep.subr.bf16.mxu0 0
  %1119 = vmatpush1.bf16.msra.mxu0 0
  %1120 = vmatprep.subr.bf16.mxu0 0
  %1121 = vmatpush1.bf16.msra.mxu0 0
  %1122 = vmatprep.subr.bf16.mxu0 0
  %1123 = vmatpush1.bf16.msra.mxu0 0
  %1124 = vmatprep.subr.bf16.mxu0 0
  %1125 = vmatpush1.bf16.msra.mxu0 0
  %1126 = vmatprep.subr.bf16.mxu0 0
  %1127 = vmatpush1.bf16.msra.mxu0 0
  %1128 = vmatprep.subr.bf16.mxu0 0
  %1129 = vmatpush1.bf16.msra.mxu0 %v161
  %1130 = vmatprep.subr.bf16.mxu0 0
  %1131 = vmatpush1.bf16.msra.mxu0 %v160
  %1132 = vmatprep.subr.bf16.mxu0 0
  %1133 = vmatpush2.bf16.msra.mxu0 0
  %1134 = vmatprep.subr.bf16.mxu0 0
  %1135 = vmatpush2.bf16.msra.mxu0 0
  %1136 = vmatprep.subr.bf16.mxu0 0
  %1137 = vmatpush2.bf16.msra.mxu0 0
  %1138 = vmatprep.subr.bf16.mxu0 0
  %1139 = vmatpush2.bf16.msra.mxu0 0
  %1140 = vmatprep.subr.bf16.mxu0 0
  %1141 = vmatpush2.bf16.msra.mxu0 0
  %1142 = vmatprep.subr.bf16.mxu0 0
  %1143 = vmatpush2.bf16.msra.mxu0 0
  %1144 = vmatprep.subr.bf16.mxu0 0
  %1145 = vmatpush2.bf16.msra.mxu0 0
  %1146 = vmatprep.subr.bf16.mxu0 0
  %1147 = vmatpush2.bf16.msra.mxu0 0
  %1148 = vmatprep.mubr.bf16.mxu0 0
  %1149 = vmatmul.mubr.bf16.gmra.mxu0 %v1114
  %v1150 = vpop.f32.mrf.mxu0
  %v1151 = vadd.f32 0.0, %v1150
  %v1152 = vpop.f32.mrf.mxu0
  %v1153 = vpop.f32.mrf.mxu0
  %v1154 = vpop.f32.mrf.mxu0
  %1155 = vdwg.mxu0
  %v1156 = vadd.f32 %v1104, %v1151
  %v1157 = vxor.u32 %v1156, 2147483648
  %v1158 = vmul.f32 %v1157, 1.442695
  %v1159 = vpow.pop %v1158
  %v1160 = vadd.f32 %v1159, 1.0
  %v1161 = vrcp.pop %v1160
  %v1162 = vmul.f32 1.0, %v1161
  %v1163 = vadd.f32 %v1151, %v216
  %1165 = vrot.lane.b32.xlu0 %v1163, 64
  %v1166 = vpop.permute.xlu0 %1165
  %v1168 = vmul.f32 %v1162, %v1166
  %1170 = vrot.lane.b32.xlu0 %v1168, 64
  %v1171 = vpop.permute.xlu0 %1170
  %v1173 = vadd.f32 %v1104, %v1171
  %v1174 = vtanh.pop %v1173
  %v1175 = vsub.f32 %v1050, %v1174
  %1177 = vrot.lane.b32.xlu0 %v1175, 96
  %v1178 = vpop.permute.xlu0 %1177
  %v1180 = vmul.f32 %v1162, %v1178
  %1182 = vrot.lane.b32.xlu0 %v1180, 32
  %v1183 = vpop.permute.xlu0 %1182
  %v1185 = vadd.f32 %v1174, %v1183
  %v1186 = vpack.c.bf16 %v1185, %v1185
  %v1187 = vld [vmem:[%s5] sm:$0xf]
  %v1188 = vld [vmem:[%s5 + $0x4] sm:$0xf]
  %v1189 = vld [vmem:[%s5 + $0x8] sm:$0xf]
  %v1190 = vld [vmem:[%s5 + $0xc] sm:$0xf]
  %v1191 = vld [vmem:[%s6] sm:$0x1]
  %v1193 = vlaneseq
  %v1194 = vshrl.u32 %v1193, 7
  %v1195 = vsub.s32 0, %v1194
  %v1196 = vrot.slane %v1191, %v1195
  %1199 = vrot.lane.b32.xlu0 %v1186, 64
  %v1200 = vpop.permute.xlu0 %1199
  %v1205 = vunpack.c.l.b16 %v1187
  %v1206 = vunpack.c.l.b16 %v1188
  %v1207 = vunpack.c.l.b16 %v1189
  %v1208 = vunpack.c.l.b16 %v1190
  %v1209 = vpack.c.b16 %v1206, %v1205
  %v1210 = vpack.c.b16 %v1208, %v1207
  %v1214 = vsel %vm164, %v1200, 0
  %1216 = vmatprep.subr.bf16.mxu0 0
  %1217 = vmatpush1.bf16.msra.mxu0 0
  %1218 = vmatprep.subr.bf16.mxu0 0
  %1219 = vmatpush1.bf16.msra.mxu0 0
  %1220 = vmatprep.subr.bf16.mxu0 0
  %1221 = vmatpush1.bf16.msra.mxu0 0
  %1222 = vmatprep.subr.bf16.mxu0 0
  %1223 = vmatpush1.bf16.msra.mxu0 0
  %1224 = vmatprep.subr.bf16.mxu0 0
  %1225 = vmatpush1.bf16.msra.mxu0 0
  %1226 = vmatprep.subr.bf16.mxu0 0
  %1227 = vmatpush1.bf16.msra.mxu0 0
  %1228 = vmatprep.subr.bf16.mxu0 0
  %1229 = vmatpush1.bf16.msra.mxu0 %v1210
  %1230 = vmatprep.subr.bf16.mxu0 0
  %1231 = vmatpush1.bf16.msra.mxu0 %v1209
  %1232 = vmatprep.subr.bf16.mxu0 0
  %1233 = vmatpush2.bf16.msra.mxu0 0
  %1234 = vmatprep.subr.bf16.mxu0 0
  %1235 = vmatpush2.bf16.msra.mxu0 0
  %1236 = vmatprep.subr.bf16.mxu0 0
  %1237 = vmatpush2.bf16.msra.mxu0 0
  %1238 = vmatprep.subr.bf16.mxu0 0
  %1239 = vmatpush2.bf16.msra.mxu0 0
  %1240 = vmatprep.subr.bf16.mxu0 0
  %1241 = vmatpush2.bf16.msra.mxu0 0
  %1242 = vmatprep.subr.bf16.mxu0 0
  %1243 = vmatpush2.bf16.msra.mxu0 0
  %1244 = vmatprep.subr.bf16.mxu0 0
  %1245 = vmatpush2.bf16.msra.mxu0 0
  %1246 = vmatprep.subr.bf16.mxu0 0
  %1247 = vmatpush2.bf16.msra.mxu0 0
  %1248 = vmatprep.mubr.bf16.mxu0 0
  %1249 = vmatmul.mubr.bf16.gmra.mxu0 %v1214
  %v1250 = vpop.f32.mrf.mxu0
  %v1251 = vadd.f32 %v1196, %v1250
  %v1252 = vpop.f32.mrf.mxu0
  %v1253 = vpop.f32.mrf.mxu0
  %v1254 = vpop.f32.mrf.mxu0
  %1255 = vdwg.mxu0
  %1256 = vst [vmem:[%s7] sm:$0xff] %v1251
  %1258 = vrot.lane.b32.xlu0 %v1185, 64
  %v1259 = vpop.permute.xlu0 %1258
  %1261 = vst.msk [vmem:[%s8] sm:$0xff] %vm164, %v1259
  // Predicated region
  $region30: #{encoder_rnn_with_vector.1} parent=0 // pred_check
    _
  $region31: #{encoder_rnn_with_vector.1} parent=0 // pred_check_branch
    %1263 = sbr.rel (0) target = $region33
  $region32: #{encoder_rnn_with_vector.1} parent=0 // pred_region
    _
  $region33: #{encoder_rnn_with_vector.1} parent=0 // pred_fallthru
    _
  // Predicated region
  $region34: #{encoder_rnn_with_vector.1} parent=0 // pred_check
    _
  $region35: #{encoder_rnn_with_vector.1} parent=0 // pred_check_branch
    %1265 = sbr.rel (0) target = $region37
  $region36: #{encoder_rnn_with_vector.1} parent=0 // pred_region
    _
  $region37: #{encoder_rnn_with_vector.1} parent=0 // pred_fallthru
    _
  // Predicated region
  $region38: #{encoder_rnn_with_vector.1} parent=0 // pred_check
    _
  $region39: #{encoder_rnn_with_vector.1} parent=0 // pred_check_branch
    %1267 = sbr.rel (0) target = $region41
  $region40: #{encoder_rnn_with_vector.1} parent=0 // pred_region
    _
  $region41: #{encoder_rnn_with_vector.1} parent=0 // pred_fallthru
    _
  // Predicated region
  $region42: #{encoder_rnn_with_vector.1} parent=0 // pred_check
    _
  $region43: #{encoder_rnn_with_vector.1} parent=0 // pred_check_branch
    %1269 = sbr.rel (0) target = $region45
  $region44: #{encoder_rnn_with_vector.1} parent=0 // pred_region
    _
  $region45: #{encoder_rnn_with_vector.1} parent=0 // pred_fallthru
    _

</llo_original>
